<compile_context>
chip_gen: v5e
topology: v5e:2x2
jax: 0.10.0
libtpu: 0.0.40
codegen_flags: <defaults>
</compile_context>

<pallas_src>
import functools

import jax
import jax.numpy as jnp
from jax.experimental import pallas as pl
from jax.experimental.pallas import tpu as pltpu


_VMEM_BUDGET = 28 << 20  # target pass-1 footprint; safe headroom on v5e/v6e/v7x


def _round_up(x, m):
    return ((x + m - 1) // m) * m


def _pass1_vmem_estimate(TH, H, W, Cin_p, Cout, use_direct):
    Wp = W + 2
    thwp_pad = _round_up(TH * Wp, 128)
    lrt = (min(TH, H) + 3) * Wp + 256
    scratch = 0 if use_direct else 9 * Cin_p * thwp_pad * 2         # bf16 im2col
    return (scratch
            + 2 * Cin_p * lrt * 2            # double-buffered bf16 input tile
            + 2 * Cout * 9 * Cin_p * 2       # double-buffered bf16 weights
            + 2 * Cout * thwp_pad * 2        # double-buffered bf16 conv tile
            + 2 * Cout * 2 * 4)              # stats (tiny)


def _pick_row_tile(H, W, Cin_p, Cout, use_direct, budget=_VMEM_BUDGET):
    # Candidates: no tiling, or row tiles that divide H, are sublane-friendly (x8) and keep
    # the flattened pass-2 output block lane-dense ((TH*W) % 128 == 0).
    cands = [H] + [d for d in range(8, H, 8) if H % d == 0 and (d * W) % 128 == 0]
    cands = sorted(set(cands), reverse=True)
    for th in cands:
        if _pass1_vmem_estimate(th, H, W, Cin_p, Cout, use_direct) <= budget:
            return th
    # TODO(synk): shapes with no friendly divisor fall back to the smallest candidate; stream
    # rows with manual DMA (pl.ANY + make_async_copy) if even that exceeds the budget.
    return cands[-1]


def _vmem_limit(nbytes):
    return int(min(max(int(nbytes * 1.5) + (2 << 20), 16 << 20), 64 << 20))


def _conv_stats_kernel(x_ref, w_ref, conv_ref, stats_ref, *scratch,
                       TH, W, Wp, Cin_p, KH, KW, THWp_pad):
    """One (image, row-tile) step: 3x3 conv as bf16 MXU matmul(s) with f32 accumulation,
    one lane-aligned bf16 conv tile, and masked per-channel sum / sum-of-squares."""
    THWp = TH * Wp
    if scratch:
        # Small-Cin path: build a (9*Cin_p, THWp_pad) bf16 im2col scratch with 9 shifted,
        # full-width lane slices (sublane-aligned 16-row groups), then ONE matmul, K = 9*Cin_p.
        pcol_ref, = scratch
        for dy in range(KH):
            for dx in range(KW):
                k = dy * KW + dx
                pcol_ref[pl.ds(k * Cin_p, Cin_p), :] = (
                    x_ref[0, 0, :, pl.ds(dy * Wp + dx, THWp_pad)])
        y = jnp.dot(w_ref[...], pcol_ref[...], preferred_element_type=jnp.float32)
    else:
        # Large-Cin path: no materialized im2col (9x less VMEM); accumulate 9 shifted matmuls
        # (each with K = Cin_p) straight from the input tile.
        y = jnp.zeros((w_ref.shape[0], THWp_pad), jnp.float32)
        for dy in range(KH):
            for dx in range(KW):
                k = dy * KW + dx
                y = y + jnp.dot(w_ref[:, pl.ds(k * Cin_p, Cin_p)],
                                x_ref[0, 0, :, pl.ds(dy * Wp + dx, THWp_pad)],
                                preferred_element_type=jnp.float32)

    # Validity mask (computed once per step): columns >= TH*Wp are the 128-lane padding, and
    # within each image row the last (Wp - W) columns are the width-halo wrap-around.
    cols = jax.lax.broadcasted_iota(jnp.int32, (1, THWp_pad), 1)
    valid = (cols < THWp) & ((cols % Wp) < W)
    ym = jnp.where(valid, y, 0.0)
    stats_ref[0, 0, :, 0:1] = jnp.sum(ym, axis=1, keepdims=True)        # per-channel sum
    stats_ref[0, 0, :, 1:2] = jnp.sum(ym * ym, axis=1, keepdims=True)   # per-channel sumsq
    conv_ref[0, 0] = y.astype(conv_ref.dtype)                           # full lane-dense store


def _bn_lrelu_kernel(c_ref, scale_ref, shift_ref, o_ref, *, TH, W, Wp, slope):
    """Fused BN affine + LeakyReLU + width compaction on one (Cout, THWp_pad) tile."""
    y = c_ref[0, 0].astype(jnp.float32) * scale_ref[...] + shift_ref[...]
    y = jnp.where(y >= 0.0, y, slope * y)
    # Drop the 2-px width halo here: pass 2 is HBM-bound, so the unaligned slices are filler.
    for h in range(TH):
        o_ref[0, :, pl.ds(h * W, W)] = y[:, h * Wp:h * Wp + W].astype(o_ref.dtype)


def conv_block_forward(x_nchw, w_oihw, bias, gamma, beta, *,
                       eps=1e-5, relu_slope=0.2, row_tile=None, use_direct=None):
    """ConvBlock forward: Conv2d(3x3, s=1, p=1) -> BatchNorm2d (batch stats) -> LeakyReLU.

    x_nchw: (N, Cin, H, W); w_oihw: (Cout, Cin, 3, 3); bias/gamma/beta: (Cout,).
    Returns (N, Cout, H, W) in NCHW, matching the PyTorch module.
    """
    N, Cin, H, W = x_nchw.shape
    Cout, Cin_w, KH, KW = w_oihw.shape
    assert Cin_w == Cin and KH == 3 and KW == 3, "kernel implements the 3x3/s1/p1 config"
    # The conv bias is a per-channel constant: training-mode BatchNorm subtracts the batch
    # mean (which absorbs it exactly) and its variance is unchanged, so the forward output is
    # identical without it.  (Only valid because BN immediately follows the conv.)
    del bias

    Cin_p = _round_up(Cin, 16)               # bf16 sublane packing: 16 rows per vreg
    Wp = W + 2                               # width + 1-px halo on each side

    if use_direct is None:
        th0 = _pick_row_tile(H, W, Cin_p, Cout, False)
        use_direct = (Cin_p >= 128) or (
            _pass1_vmem_estimate(th0, H, W, Cin_p, Cout, False) > _VMEM_BUDGET)
    if row_tile is None:
        TH = _pick_row_tile(H, W, Cin_p, Cout, use_direct)
    else:
        TH = int(row_tile)
        assert H % TH == 0 and (TH == H or (TH % 8 == 0 and (TH * W) % 128 == 0)), \
            "row_tile must divide H, be a multiple of 8 and keep TH*W a multiple of 128"
    n_rt = H // TH
    THWp = TH * Wp
    THWp_pad = _round_up(THWp, 128)
    pad_lanes = THWp_pad - THWp
    bot_rows = 1 + -(-(2 + pad_lanes) // Wp)   # keeps the furthest (dy=2,dx=2) tap slice in-bounds

    # Pad (channels -> Cin_p, 1 top / bot_rows bottom, 1 left / 1 right), cast to bf16 and
    # flatten per channel so every 3x3 tap is a single contiguous lane slice.
    xpad = jnp.pad(x_nchw.astype(jnp.bfloat16),
                   ((0, 0), (0, Cin_p - Cin), (1, bot_rows), (1, 1)))
    Lf = (H + 1 + bot_rows) * Wp
    xf = xpad.reshape(N, Cin_p, Lf)            # contiguous -> free reshape

    if n_rt == 1:
        Lrt = Lf
        xrt = xf.reshape(N, 1, Cin_p, Lf)      # free reshape
    else:
        # Wrapper-side halo'd row tiles: each tile carries its own 2-row conv halo so each
        # pass-1 grid step is a plain Blocked read (no overlapping-window BlockSpec needed).
        # TODO(synk): stream these with manual double-buffered DMA from the flat image instead
        # of materializing the (small) duplicated halo copy in HBM.
        Lrt = 2 * Wp + 2 + THWp_pad
        starts = jnp.arange(n_rt, dtype=jnp.int32) * THWp
        idx = starts[:, None] + jnp.arange(Lrt, dtype=jnp.int32)[None, :]
        xrt = jnp.transpose(xf[:, :, idx], (0, 2, 1, 3))     # (N, n_rt, Cin_p, Lrt)

    # (Cout, 9*Cin_p) bf16 weight matrix; k-ordering (dy, dx, ci) matches the tap slices.
    w_mat = jnp.pad(w_oihw, ((0, 0), (0, Cin_p - Cin), (0, 0), (0, 0)))
    w_mat = jnp.transpose(w_mat, (0, 2, 3, 1)).reshape(Cout, KH * KW * Cin_p)
    w_mat = w_mat.astype(jnp.bfloat16)

    # ---- Pass 1: conv (bf16 MXU, f32 accumulate) + per-(image, row-tile) channel stats ----
    p1_bytes = ((0 if use_direct else 9 * Cin_p * THWp_pad * 2)
                + 2 * Cin_p * Lrt * 2 + 2 * Cout * KH * KW * Cin_p * 2
                + 2 * Cout * THWp_pad * 2 + 2 * Cout * 2 * 4)
    conv_kern = functools.partial(_conv_stats_kernel, TH=TH, W=W, Wp=Wp, Cin_p=Cin_p,
                                  KH=KH, KW=KW, THWp_pad=THWp_pad)
    conv_i, stats = pl.pallas_call(
        conv_kern,
        out_shape=(jax.ShapeDtypeStruct((N, n_rt, Cout, THWp_pad), jnp.bfloat16),
                   jax.ShapeDtypeStruct((N, n_rt, Cout, 2), jnp.float32)),
        grid=(N, n_rt),
        in_specs=[
            pl.BlockSpec((1, 1, Cin_p, Lrt), lambda n, t: (n, t, 0, 0)),
            pl.BlockSpec((Cout, KH * KW * Cin_p), lambda n, t: (0, 0)),
        ],
        out_specs=(
            pl.BlockSpec((1, 1, Cout, THWp_pad), lambda n, t: (n, t, 0, 0)),
            pl.BlockSpec((1, 1, Cout, 2), lambda n, t: (n, t, 0, 0)),
        ),
        scratch_shapes=([] if use_direct
                        else [pltpu.VMEM((KH * KW * Cin_p, THWp_pad), jnp.bfloat16)]),
        compiler_params=pltpu.CompilerParams(
            dimension_semantics=("parallel", "parallel"),
            vmem_limit_bytes=_vmem_limit(p1_bytes)),
    )(xrt, w_mat)

    # ---- Tiny per-channel BN finalize (N*n_rt*Cout*2 floats) in plain JAX ------------------
    # NOTE: var = E[x^2] - E[x]^2 in f32; acceptable here (no conv bias inflating the mean).
    count = float(N * H * W)
    sums = jnp.sum(stats[..., 0], axis=(0, 1))
    sumsq = jnp.sum(stats[..., 1], axis=(0, 1))
    mean = sums / count
    var = jnp.maximum(sumsq / count - mean * mean, 0.0)      # biased batch variance
    inv = jax.lax.rsqrt(var + eps)
    g32 = gamma.astype(jnp.float32)
    scale = (g32 * inv).reshape(Cout, 1)
    shift = (beta.astype(jnp.float32) - mean * g32 * inv).reshape(Cout, 1)

    # ---- Pass 2: fused BN affine + LeakyReLU + width compaction (lane-dense output) --------
    out_dtype = x_nchw.dtype
    p2_bytes = (2 * Cout * THWp_pad * 2
                + 2 * Cout * TH * W * jnp.dtype(out_dtype).itemsize + 4 * Cout * 4)
    # TODO(synk): when Cout*TH*W is tiny, fold a small N factor into the pass-2 (and pass-1)
    # block to amortize the ~0.35us per-grid-step overhead.
    out_flat = pl.pallas_call(
        functools.partial(_bn_lrelu_kernel, TH=TH, W=W, Wp=Wp, slope=relu_slope),
        out_shape=jax.ShapeDtypeStruct((N, Cout, H * W), out_dtype),
        grid=(N, n_rt),
        in_specs=[
            pl.BlockSpec((1, 1, Cout, THWp_pad), lambda n, t: (n, t, 0, 0)),
            pl.BlockSpec((Cout, 1), lambda n, t: (0, 0)),
            pl.BlockSpec((Cout, 1), lambda n, t: (0, 0)),
        ],
        out_specs=pl.BlockSpec((1, Cout, TH * W), lambda n, t: (n, 0, t)),
        compiler_params=pltpu.CompilerParams(
            dimension_semantics=("parallel", "parallel"),
            vmem_limit_bytes=_vmem_limit(p2_bytes)),
    )(conv_i, scale, shift)

    return out_flat.reshape(N, Cout, H, W)     # contiguous -> free reshape, already NCHW


def conv_block_reference(x, w, b, gamma, beta, eps=1e-5, slope=0.2):
    """Pure-JAX f32 reference (correctness check only)."""
    y = jax.lax.conv_general_dilated(
        x.astype(jnp.float32), w.astype(jnp.float32),
        window_strides=(1, 1), padding=((1, 1), (1, 1)),
        dimension_numbers=("NCHW", "OIHW", "NCHW"))
    y = y + b[None, :, None, None]
    mean = jnp.mean(y, axis=(0, 2, 3), keepdims=True)
    var = jnp.mean((y - mean) ** 2, axis=(0, 2, 3), keepdims=True)
    y = (y - mean) * jax.lax.rsqrt(var + eps) * gamma[None, :, None, None] + beta[None, :, None, None]
    return jnp.where(y >= 0, y, slope * y)


if __name__ == "__main__":
    # Small shapes consistent with the module: batch=2, in_fea=4, out_fea=8, 16x16 spatial.
    N, Cin, Cout, H, W, K = 2, 4, 8, 16, 16, 3
    key = jax.random.PRNGKey(0)
    kx, kw, kb, kg, kbt = jax.random.split(key, 5)

    x = jax.random.normal(kx, (N, Cin, H, W), dtype=jnp.float32)
    conv_w = 0.1 * jax.random.normal(kw, (Cout, Cin, K, K), dtype=jnp.float32)
    conv_b = 0.05 * jax.random.normal(kb, (Cout,), dtype=jnp.float32)
    # nn.BatchNorm2d affine params (fresh module is ones/zeros; perturbed to exercise the path).
    bn_gamma = 1.0 + 0.1 * jax.random.normal(kg, (Cout,), dtype=jnp.float32)
    bn_beta = 0.1 * jax.random.normal(kbt, (Cout,), dtype=jnp.float32)
    # dropout=None in the default ConvBlock config -> no Dropout2d layer.

    ref = jax.block_until_ready(conv_block_reference(x, conv_w, conv_b, bn_gamma, bn_beta))

    # bf16 MXU operands + bf16 intermediate -> tolerance loosened vs. the f32 reference.
    configs = {
        "auto (single im2col matmul, one row tile)": {},
        "row-tiled (TH=8, exercises the H-halo tiling path)": {"row_tile": 8},
        "direct-accumulate (no im2col scratch)": {"use_direct": True},
    }
    for name, kwargs in configs.items():
        fwd = jax.jit(functools.partial(conv_block_forward, **kwargs))
        out = jax.block_until_ready(fwd(x, conv_w, conv_b, bn_gamma, bn_beta))
        assert out.shape == (N, Cout, H, W), (name, out.shape)
        err = float(jnp.max(jnp.abs(out.astype(jnp.float32) - ref)))
        assert err < 5e-2, (name, err)

    print("KERNEL_OK")
</pallas_src>

<mosaic_0001>
module attributes {stable_mosaic.version = 11 : i64} {
  func.func @_conv_stats_kernel(%arg0: i32, %arg1: i32, %arg2: memref<1x1x16x432xbf16, #tpu.memory_space<vmem>>, %arg3: memref<8x144xbf16, #tpu.memory_space<vmem>>, %arg4: memref<1x1x8x384xbf16, #tpu.memory_space<vmem>>, %arg5: memref<1x1x8x2xf32, #tpu.memory_space<vmem>>, %arg6: memref<144x384xbf16, #tpu.memory_space<vmem>>) attributes {dimension_semantics = [#tpu.dimension_semantics<parallel>, #tpu.dimension_semantics<parallel>], iteration_bounds = array<i64: 2, 1>, scalar_prefetch = 0 : i64, scratch_operands = 1 : i64, tpu.core_type = #tpu.core_type<tc>, window_params = [{transform_indices = @transform_0, window_bounds = array<i64: 1, 1, 16, 432>}, {pipeline_mode = #tpu.pipeline_mode<synchronous>, transform_indices = @transform_1, window_bounds = array<i64: 8, 144>}, {transform_indices = @transform_2, window_bounds = array<i64: 1, 1, 8, 384>}, {transform_indices = @transform_3, window_bounds = array<i64: 1, 1, 8, 2>}]} {
    %c0 = arith.constant 0 : index
    %c0_0 = arith.constant 0 : index
    %c0_1 = arith.constant 0 : index
    %c0_2 = arith.constant 0 : index
    %0 = vector.load %arg2[%c0, %c0_0, %c0_1, %c0_2] : memref<1x1x16x432xbf16, #tpu.memory_space<vmem>>, vector<1x1x16x384xbf16>
    %1 = vector.shape_cast %0 : vector<1x1x16x384xbf16> to vector<16x384xbf16>
    %c0_3 = arith.constant 0 : index
    %c0_4 = arith.constant 0 : index
    %2 = vector.load %arg6[%c0_3, %c0_4] : memref<144x384xbf16, #tpu.memory_space<vmem>>, vector<16x384xbf16>
    tpu.vector_store %arg6[%c0_3, %c0_4], %1 {strides = array<i32>} : memref<144x384xbf16, #tpu.memory_space<vmem>>, vector<16x384xbf16>,
    %c0_5 = arith.constant 0 : index
    %c0_6 = arith.constant 0 : index
    %c0_7 = arith.constant 0 : index
    %c1 = arith.constant 1 : index
    %3 = vector.load %arg2[%c0_5, %c0_6, %c0_7, %c1] : memref<1x1x16x432xbf16, #tpu.memory_space<vmem>>, vector<1x1x16x384xbf16>
    %4 = vector.shape_cast %3 : vector<1x1x16x384xbf16> to vector<16x384xbf16>
    %c16 = arith.constant 16 : index
    %c0_8 = arith.constant 0 : index
    %5 = vector.load %arg6[%c16, %c0_8] : memref<144x384xbf16, #tpu.memory_space<vmem>>, vector<16x384xbf16>
    tpu.vector_store %arg6[%c16, %c0_8], %4 {strides = array<i32>} : memref<144x384xbf16, #tpu.memory_space<vmem>>, vector<16x384xbf16>,
    %c0_9 = arith.constant 0 : index
    %c0_10 = arith.constant 0 : index
    %c0_11 = arith.constant 0 : index
    %c2 = arith.constant 2 : index
    %6 = vector.load %arg2[%c0_9, %c0_10, %c0_11, %c2] : memref<1x1x16x432xbf16, #tpu.memory_space<vmem>>, vector<1x1x16x384xbf16>
    %7 = vector.shape_cast %6 : vector<1x1x16x384xbf16> to vector<16x384xbf16>
    %c32 = arith.constant 32 : index
    %c0_12 = arith.constant 0 : index
    %8 = vector.load %arg6[%c32, %c0_12] : memref<144x384xbf16, #tpu.memory_space<vmem>>, vector<16x384xbf16>
    tpu.vector_store %arg6[%c32, %c0_12], %7 {strides = array<i32>} : memref<144x384xbf16, #tpu.memory_space<vmem>>, vector<16x384xbf16>,
    %c0_13 = arith.constant 0 : index
    %c0_14 = arith.constant 0 : index
    %c0_15 = arith.constant 0 : index
    %c18 = arith.constant 18 : index
    %9 = vector.load %arg2[%c0_13, %c0_14, %c0_15, %c18] : memref<1x1x16x432xbf16, #tpu.memory_space<vmem>>, vector<1x1x16x384xbf16>
    %10 = vector.shape_cast %9 : vector<1x1x16x384xbf16> to vector<16x384xbf16>
    %c48 = arith.constant 48 : index
    %c0_16 = arith.constant 0 : index
    %11 = vector.load %arg6[%c48, %c0_16] : memref<144x384xbf16, #tpu.memory_space<vmem>>, vector<16x384xbf16>
    tpu.vector_store %arg6[%c48, %c0_16], %10 {strides = array<i32>} : memref<144x384xbf16, #tpu.memory_space<vmem>>, vector<16x384xbf16>,
    %c0_17 = arith.constant 0 : index
    %c0_18 = arith.constant 0 : index
    %c0_19 = arith.constant 0 : index
    %c19 = arith.constant 19 : index
    %12 = vector.load %arg2[%c0_17, %c0_18, %c0_19, %c19] : memref<1x1x16x432xbf16, #tpu.memory_space<vmem>>, vector<1x1x16x384xbf16>
    %13 = vector.shape_cast %12 : vector<1x1x16x384xbf16> to vector<16x384xbf16>
    %c64 = arith.constant 64 : index
    %c0_20 = arith.constant 0 : index
    %14 = vector.load %arg6[%c64, %c0_20] : memref<144x384xbf16, #tpu.memory_space<vmem>>, vector<16x384xbf16>
    tpu.vector_store %arg6[%c64, %c0_20], %13 {strides = array<i32>} : memref<144x384xbf16, #tpu.memory_space<vmem>>, vector<16x384xbf16>,
    %c0_21 = arith.constant 0 : index
    %c0_22 = arith.constant 0 : index
    %c0_23 = arith.constant 0 : index
    %c20 = arith.constant 20 : index
    %15 = vector.load %arg2[%c0_21, %c0_22, %c0_23, %c20] : memref<1x1x16x432xbf16, #tpu.memory_space<vmem>>, vector<1x1x16x384xbf16>
    %16 = vector.shape_cast %15 : vector<1x1x16x384xbf16> to vector<16x384xbf16>
    %c80 = arith.constant 80 : index
    %c0_24 = arith.constant 0 : index
    %17 = vector.load %arg6[%c80, %c0_24] : memref<144x384xbf16, #tpu.memory_space<vmem>>, vector<16x384xbf16>
    tpu.vector_store %arg6[%c80, %c0_24], %16 {strides = array<i32>} : memref<144x384xbf16, #tpu.memory_space<vmem>>, vector<16x384xbf16>,
    %c0_25 = arith.constant 0 : index
    %c0_26 = arith.constant 0 : index
    %c0_27 = arith.constant 0 : index
    %c36 = arith.constant 36 : index
    %18 = vector.load %arg2[%c0_25, %c0_26, %c0_27, %c36] : memref<1x1x16x432xbf16, #tpu.memory_space<vmem>>, vector<1x1x16x384xbf16>
    %19 = vector.shape_cast %18 : vector<1x1x16x384xbf16> to vector<16x384xbf16>
    %c96 = arith.constant 96 : index
    %c0_28 = arith.constant 0 : index
    %20 = vector.load %arg6[%c96, %c0_28] : memref<144x384xbf16, #tpu.memory_space<vmem>>, vector<16x384xbf16>
    tpu.vector_store %arg6[%c96, %c0_28], %19 {strides = array<i32>} : memref<144x384xbf16, #tpu.memory_space<vmem>>, vector<16x384xbf16>,
    %c0_29 = arith.constant 0 : index
    %c0_30 = arith.constant 0 : index
    %c0_31 = arith.constant 0 : index
    %c37 = arith.constant 37 : index
    %21 = vector.load %arg2[%c0_29, %c0_30, %c0_31, %c37] : memref<1x1x16x432xbf16, #tpu.memory_space<vmem>>, vector<1x1x16x384xbf16>
    %22 = vector.shape_cast %21 : vector<1x1x16x384xbf16> to vector<16x384xbf16>
    %c112 = arith.constant 112 : index
    %c0_32 = arith.constant 0 : index
    %23 = vector.load %arg6[%c112, %c0_32] : memref<144x384xbf16, #tpu.memory_space<vmem>>, vector<16x384xbf16>
    tpu.vector_store %arg6[%c112, %c0_32], %22 {strides = array<i32>} : memref<144x384xbf16, #tpu.memory_space<vmem>>, vector<16x384xbf16>,
    %c0_33 = arith.constant 0 : index
    %c0_34 = arith.constant 0 : index
    %c0_35 = arith.constant 0 : index
    %c38 = arith.constant 38 : index
    %24 = vector.load %arg2[%c0_33, %c0_34, %c0_35, %c38] : memref<1x1x16x432xbf16, #tpu.memory_space<vmem>>, vector<1x1x16x384xbf16>
    %25 = vector.shape_cast %24 : vector<1x1x16x384xbf16> to vector<16x384xbf16>
    %c128 = arith.constant 128 : index
    %c0_36 = arith.constant 0 : index
    %26 = vector.load %arg6[%c128, %c0_36] : memref<144x384xbf16, #tpu.memory_space<vmem>>, vector<16x384xbf16>
    tpu.vector_store %arg6[%c128, %c0_36], %25 {strides = array<i32>} : memref<144x384xbf16, #tpu.memory_space<vmem>>, vector<16x384xbf16>,
    %c0_37 = arith.constant 0 : index
    %c0_38 = arith.constant 0 : index
    %27 = vector.load %arg3[%c0_37, %c0_38] : memref<8x144xbf16, #tpu.memory_space<vmem>>, vector<8x144xbf16>
    %c0_39 = arith.constant 0 : index
    %c0_40 = arith.constant 0 : index
    %28 = vector.load %arg6[%c0_39, %c0_40] : memref<144x384xbf16, #tpu.memory_space<vmem>>, vector<144x384xbf16>
    %cst = arith.constant dense<0.000000e+00> : vector<8x384xf32>
    %29 = tpu.matmul %27, %28, %cst {dimension_numbers = #tpu.dot_dimension_numbers<[1], [0], [0], [1], [0, 0, 1, 1], [], []>} : vector<8x144xbf16>, vector<144x384xbf16>, vector<8x384xf32> -> vector<8x384xf32>
    %30 = tpu.iota {dimensions = array<i32: 1>} : vector<1x384xi32>
    %c288_i32 = arith.constant 288 : i32
    %31 = vector.broadcast %c288_i32 : i32 to vector<1x384xi32>
    %32 = arith.cmpi slt, %30, %31 : vector<1x384xi32>
    %c18_i32 = arith.constant 18 : i32
    %c0_i32 = arith.constant 0 : i32
    %33 = arith.cmpi eq, %c18_i32, %c0_i32 : i32
    %c1_i32 = arith.constant 1 : i32
    %34 = arith.select %33, %c1_i32, %c18_i32 : i32
    %35 = vector.broadcast %34 : i32 to vector<1x384xi32>
    %36 = arith.remsi %30, %35 : vector<1x384xi32>
    %c0_i32_41 = arith.constant 0 : i32
    %37 = vector.broadcast %c0_i32_41 : i32 to vector<1x384xi32>
    %38 = arith.cmpi ne, %36, %37 : vector<1x384xi32>
    %c0_i32_42 = arith.constant 0 : i32
    %39 = vector.broadcast %c0_i32_42 : i32 to vector<1x384xi32>
    %40 = arith.cmpi slt, %36, %39 : vector<1x384xi32>
    %c0_i32_43 = arith.constant 0 : i32
    %41 = arith.cmpi slt, %34, %c0_i32_43 : i32
    %42 = vector.broadcast %41 : i1 to vector<1x384xi1>
    %43 = vector.broadcast %42 : vector<1x384xi1> to vector<1x384xi1>
    %44 = arith.xori %40, %43 : vector<1x384xi1>
    %45 = arith.andi %44, %38 : vector<1x384xi1>
    %46 = vector.broadcast %34 : i32 to vector<1x384xi32>
    %47 = arith.addi %36, %46 : vector<1x384xi32>
    %48 = arith.select %45, %47, %36 : vector<1x384xi1>, vector<1x384xi32>
    %c16_i32 = arith.constant 16 : i32
    %49 = vector.broadcast %c16_i32 : i32 to vector<1x384xi32>
    %50 = arith.cmpi slt, %48, %49 : vector<1x384xi32>
    %51 = arith.andi %32, %50 : vector<1x384xi1>
    %cst_44 = arith.constant 0.000000e+00 : f32
    %52 = vector.shape_cast %51 : vector<1x384xi1> to vector<1x384xi1>
    %53 = vector.broadcast %52 : vector<1x384xi1> to vector<8x384xi1>
    %54 = vector.broadcast %cst_44 : f32 to vector<8x384xf32>
    %55 = arith.select %53, %29, %54 : vector<8x384xi1>, vector<8x384xf32>
    %cst_45 = arith.constant dense<0.000000e+00> : vector<8xf32>
    %56 = vector.multi_reduction <add>, %55, %cst_45 [1] : vector<8x384xf32> to vector<8xf32>
    %57 = vector.shape_cast %56 : vector<8xf32> to vector<8x1xf32>
    %c0_46 = arith.constant 0 : index
    %c0_47 = arith.constant 0 : index
    %c0_48 = arith.constant 0 : index
    %c0_49 = arith.constant 0 : index
    %58 = vector.load %arg5[%c0_46, %c0_47, %c0_48, %c0_49] : memref<1x1x8x2xf32, #tpu.memory_space<vmem>>, vector<1x1x8x1xf32>
    %59 = vector.shape_cast %58 : vector<1x1x8x1xf32> to vector<8x1xf32>
    %60 = vector.shape_cast %57 : vector<8x1xf32> to vector<1x1x8x1xf32>
    tpu.vector_store %arg5[%c0_46, %c0_47, %c0_48, %c0_49], %60 {strides = array<i32>} : memref<1x1x8x2xf32, #tpu.memory_space<vmem>>, vector<1x1x8x1xf32>,
    %61 = arith.mulf %55, %55 : vector<8x384xf32>
    %cst_50 = arith.constant dense<0.000000e+00> : vector<8xf32>
    %62 = vector.multi_reduction <add>, %61, %cst_50 [1] : vector<8x384xf32> to vector<8xf32>
    %63 = vector.shape_cast %62 : vector<8xf32> to vector<8x1xf32>
    %c0_51 = arith.constant 0 : index
    %c0_52 = arith.constant 0 : index
    %c0_53 = arith.constant 0 : index
    %c1_54 = arith.constant 1 : index
    %64 = vector.load %arg5[%c0_51, %c0_52, %c0_53, %c1_54] : memref<1x1x8x2xf32, #tpu.memory_space<vmem>>, vector<1x1x8x1xf32>
    %65 = vector.shape_cast %64 : vector<1x1x8x1xf32> to vector<8x1xf32>
    %66 = vector.shape_cast %63 : vector<8x1xf32> to vector<1x1x8x1xf32>
    tpu.vector_store %arg5[%c0_51, %c0_52, %c0_53, %c1_54], %66 {strides = array<i32>} : memref<1x1x8x2xf32, #tpu.memory_space<vmem>>, vector<1x1x8x1xf32>,
    %67 = arith.truncf %29 : vector<8x384xf32> to vector<8x384xbf16>
    %c0_55 = arith.constant 0 : index
    %c0_56 = arith.constant 0 : index
    %c0_57 = arith.constant 0 : index
    %c0_58 = arith.constant 0 : index
    %68 = vector.load %arg4[%c0_55, %c0_56, %c0_57, %c0_58] : memref<1x1x8x384xbf16, #tpu.memory_space<vmem>>, vector<1x1x8x384xbf16>
    %69 = vector.shape_cast %68 : vector<1x1x8x384xbf16> to vector<8x384xbf16>
    %70 = vector.shape_cast %67 : vector<8x384xbf16> to vector<1x1x8x384xbf16>
    tpu.vector_store %arg4[%c0_55, %c0_56, %c0_57, %c0_58], %70 {strides = array<i32>} : memref<1x1x8x384xbf16, #tpu.memory_space<vmem>>, vector<1x1x8x384xbf16>,
    return
  }
  func.func @transform_0(%arg0: i32, %arg1: i32) -> (i32, i32, i32, i32) {
    %c0_i32 = arith.constant 0 : i32
    %c0_i32_0 = arith.constant 0 : i32
    %c0_i32_1 = arith.constant 0 : i32
    return %arg0, %arg1, %c0_i32, %c0_i32_0 : i32, i32, i32, i32
  }
  func.func @transform_1(%arg0: i32, %arg1: i32) -> (i32, i32) {
    %c0_i32 = arith.constant 0 : i32
    %c0_i32_0 = arith.constant 0 : i32
    %c0_i32_1 = arith.constant 0 : i32
    return %c0_i32, %c0_i32_0 : i32, i32
  }
  func.func @transform_2(%arg0: i32, %arg1: i32) -> (i32, i32, i32, i32) {
    %c0_i32 = arith.constant 0 : i32
    %c0_i32_0 = arith.constant 0 : i32
    %c0_i32_1 = arith.constant 0 : i32
    return %arg0, %arg1, %c0_i32, %c0_i32_0 : i32, i32, i32, i32
  }
  func.func @transform_3(%arg0: i32, %arg1: i32) -> (i32, i32, i32, i32) {
    %c0_i32 = arith.constant 0 : i32
    %c0_i32_0 = arith.constant 0 : i32
    %c0_i32_1 = arith.constant 0 : i32
    return %arg0, %arg1, %c0_i32, %c0_i32_0 : i32, i32, i32, i32
  }
}

module attributes {stable_mosaic.version = 11 : i64} {
  func.func @_bn_lrelu_kernel(%arg0: i32, %arg1: i32, %arg2: memref<1x1x8x384xbf16, #tpu.memory_space<vmem>>, %arg3: memref<8x1xf32, #tpu.memory_space<vmem>>, %arg4: memref<8x1xf32, #tpu.memory_space<vmem>>, %arg5: memref<1x8x256xf32, #tpu.memory_space<vmem>>) attributes {dimension_semantics = [#tpu.dimension_semantics<parallel>, #tpu.dimension_semantics<parallel>], iteration_bounds = array<i64: 2, 1>, scalar_prefetch = 0 : i64, scratch_operands = 0 : i64, tpu.core_type = #tpu.core_type<tc>, window_params = [{transform_indices = @transform_0, window_bounds = array<i64: 1, 1, 8, 384>}, {pipeline_mode = #tpu.pipeline_mode<synchronous>, transform_indices = @transform_1, window_bounds = array<i64: 8, 1>}, {pipeline_mode = #tpu.pipeline_mode<synchronous>, transform_indices = @transform_2, window_bounds = array<i64: 8, 1>}, {transform_indices = @transform_3, window_bounds = array<i64: 1, 8, 256>}]} {
    %c0 = arith.constant 0 : index
    %c0_0 = arith.constant 0 : index
    %c0_1 = arith.constant 0 : index
    %c0_2 = arith.constant 0 : index
    %0 = vector.load %arg2[%c0, %c0_0, %c0_1, %c0_2] : memref<1x1x8x384xbf16, #tpu.memory_space<vmem>>, vector<1x1x8x384xbf16>
    %1 = vector.shape_cast %0 : vector<1x1x8x384xbf16> to vector<8x384xbf16>
    %2 = arith.extf %1 : vector<8x384xbf16> to vector<8x384xf32>
    %c0_3 = arith.constant 0 : index
    %c0_4 = arith.constant 0 : index
    %3 = vector.load %arg3[%c0_3, %c0_4] : memref<8x1xf32, #tpu.memory_space<vmem>>, vector<8x1xf32>
    %4 = vector.broadcast %3 : vector<8x1xf32> to vector<8x384xf32>
    %5 = arith.mulf %2, %4 : vector<8x384xf32>
    %c0_5 = arith.constant 0 : index
    %c0_6 = arith.constant 0 : index
    %6 = vector.load %arg4[%c0_5, %c0_6] : memref<8x1xf32, #tpu.memory_space<vmem>>, vector<8x1xf32>
    %7 = vector.broadcast %6 : vector<8x1xf32> to vector<8x384xf32>
    %8 = arith.addf %5, %7 : vector<8x384xf32>
    %cst = arith.constant 0.000000e+00 : f32
    %9 = vector.broadcast %cst : f32 to vector<8x384xf32>
    %10 = arith.cmpf oge, %8, %9 : vector<8x384xf32>
    %cst_7 = arith.constant 2.000000e-01 : f32
    %11 = vector.broadcast %cst_7 : f32 to vector<8x384xf32>
    %12 = arith.mulf %11, %8 : vector<8x384xf32>
    %13 = arith.select %10, %8, %12 : vector<8x384xi1>, vector<8x384xf32>
    %14 = vector.extract_strided_slice %13 {offsets = [0, 0], sizes = [8, 16], strides = [1, 1]} : vector<8x384xf32> to vector<8x16xf32>
    %c0_8 = arith.constant 0 : index
    %c0_9 = arith.constant 0 : index
    %c0_10 = arith.constant 0 : index
    %15 = vector.load %arg5[%c0_8, %c0_9, %c0_10] : memref<1x8x256xf32, #tpu.memory_space<vmem>>, vector<1x8x16xf32>
    %16 = vector.shape_cast %15 : vector<1x8x16xf32> to vector<8x16xf32>
    %17 = vector.shape_cast %14 : vector<8x16xf32> to vector<1x8x16xf32>
    tpu.vector_store %arg5[%c0_8, %c0_9, %c0_10], %17 {strides = array<i32>} : memref<1x8x256xf32, #tpu.memory_space<vmem>>, vector<1x8x16xf32>,
    %18 = vector.extract_strided_slice %13 {offsets = [0, 18], sizes = [8, 16], strides = [1, 1]} : vector<8x384xf32> to vector<8x16xf32>
    %c0_11 = arith.constant 0 : index
    %c0_12 = arith.constant 0 : index
    %c16 = arith.constant 16 : index
    %19 = vector.load %arg5[%c0_11, %c0_12, %c16] : memref<1x8x256xf32, #tpu.memory_space<vmem>>, vector<1x8x16xf32>
    %20 = vector.shape_cast %19 : vector<1x8x16xf32> to vector<8x16xf32>
    %21 = vector.shape_cast %18 : vector<8x16xf32> to vector<1x8x16xf32>
    tpu.vector_store %arg5[%c0_11, %c0_12, %c16], %21 {strides = array<i32>} : memref<1x8x256xf32, #tpu.memory_space<vmem>>, vector<1x8x16xf32>,
    %22 = vector.extract_strided_slice %13 {offsets = [0, 36], sizes = [8, 16], strides = [1, 1]} : vector<8x384xf32> to vector<8x16xf32>
    %c0_13 = arith.constant 0 : index
    %c0_14 = arith.constant 0 : index
    %c32 = arith.constant 32 : index
    %23 = vector.load %arg5[%c0_13, %c0_14, %c32] : memref<1x8x256xf32, #tpu.memory_space<vmem>>, vector<1x8x16xf32>
    %24 = vector.shape_cast %23 : vector<1x8x16xf32> to vector<8x16xf32>
    %25 = vector.shape_cast %22 : vector<8x16xf32> to vector<1x8x16xf32>
    tpu.vector_store %arg5[%c0_13, %c0_14, %c32], %25 {strides = array<i32>} : memref<1x8x256xf32, #tpu.memory_space<vmem>>, vector<1x8x16xf32>,
    %26 = vector.extract_strided_slice %13 {offsets = [0, 54], sizes = [8, 16], strides = [1, 1]} : vector<8x384xf32> to vector<8x16xf32>
    %c0_15 = arith.constant 0 : index
    %c0_16 = arith.constant 0 : index
    %c48 = arith.constant 48 : index
    %27 = vector.load %arg5[%c0_15, %c0_16, %c48] : memref<1x8x256xf32, #tpu.memory_space<vmem>>, vector<1x8x16xf32>
    %28 = vector.shape_cast %27 : vector<1x8x16xf32> to vector<8x16xf32>
    %29 = vector.shape_cast %26 : vector<8x16xf32> to vector<1x8x16xf32>
    tpu.vector_store %arg5[%c0_15, %c0_16, %c48], %29 {strides = array<i32>} : memref<1x8x256xf32, #tpu.memory_space<vmem>>, vector<1x8x16xf32>,
    %30 = vector.extract_strided_slice %13 {offsets = [0, 72], sizes = [8, 16], strides = [1, 1]} : vector<8x384xf32> to vector<8x16xf32>
    %c0_17 = arith.constant 0 : index
    %c0_18 = arith.constant 0 : index
    %c64 = arith.constant 64 : index
    %31 = vector.load %arg5[%c0_17, %c0_18, %c64] : memref<1x8x256xf32, #tpu.memory_space<vmem>>, vector<1x8x16xf32>
    %32 = vector.shape_cast %31 : vector<1x8x16xf32> to vector<8x16xf32>
    %33 = vector.shape_cast %30 : vector<8x16xf32> to vector<1x8x16xf32>
    tpu.vector_store %arg5[%c0_17, %c0_18, %c64], %33 {strides = array<i32>} : memref<1x8x256xf32, #tpu.memory_space<vmem>>, vector<1x8x16xf32>,
    %34 = vector.extract_strided_slice %13 {offsets = [0, 90], sizes = [8, 16], strides = [1, 1]} : vector<8x384xf32> to vector<8x16xf32>
    %c0_19 = arith.constant 0 : index
    %c0_20 = arith.constant 0 : index
    %c80 = arith.constant 80 : index
    %35 = vector.load %arg5[%c0_19, %c0_20, %c80] : memref<1x8x256xf32, #tpu.memory_space<vmem>>, vector<1x8x16xf32>
    %36 = vector.shape_cast %35 : vector<1x8x16xf32> to vector<8x16xf32>
    %37 = vector.shape_cast %34 : vector<8x16xf32> to vector<1x8x16xf32>
    tpu.vector_store %arg5[%c0_19, %c0_20, %c80], %37 {strides = array<i32>} : memref<1x8x256xf32, #tpu.memory_space<vmem>>, vector<1x8x16xf32>,
    %38 = vector.extract_strided_slice %13 {offsets = [0, 108], sizes = [8, 16], strides = [1, 1]} : vector<8x384xf32> to vector<8x16xf32>
    %c0_21 = arith.constant 0 : index
    %c0_22 = arith.constant 0 : index
    %c96 = arith.constant 96 : index
    %39 = vector.load %arg5[%c0_21, %c0_22, %c96] : memref<1x8x256xf32, #tpu.memory_space<vmem>>, vector<1x8x16xf32>
    %40 = vector.shape_cast %39 : vector<1x8x16xf32> to vector<8x16xf32>
    %41 = vector.shape_cast %38 : vector<8x16xf32> to vector<1x8x16xf32>
    tpu.vector_store %arg5[%c0_21, %c0_22, %c96], %41 {strides = array<i32>} : memref<1x8x256xf32, #tpu.memory_space<vmem>>, vector<1x8x16xf32>,
    %42 = vector.extract_strided_slice %13 {offsets = [0, 126], sizes = [8, 16], strides = [1, 1]} : vector<8x384xf32> to vector<8x16xf32>
    %c0_23 = arith.constant 0 : index
    %c0_24 = arith.constant 0 : index
    %c112 = arith.constant 112 : index
    %43 = vector.load %arg5[%c0_23, %c0_24, %c112] : memref<1x8x256xf32, #tpu.memory_space<vmem>>, vector<1x8x16xf32>
    %44 = vector.shape_cast %43 : vector<1x8x16xf32> to vector<8x16xf32>
    %45 = vector.shape_cast %42 : vector<8x16xf32> to vector<1x8x16xf32>
    tpu.vector_store %arg5[%c0_23, %c0_24, %c112], %45 {strides = array<i32>} : memref<1x8x256xf32, #tpu.memory_space<vmem>>, vector<1x8x16xf32>,
    %46 = vector.extract_strided_slice %13 {offsets = [0, 144], sizes = [8, 16], strides = [1, 1]} : vector<8x384xf32> to vector<8x16xf32>
    %c0_25 = arith.constant 0 : index
    %c0_26 = arith.constant 0 : index
    %c128 = arith.constant 128 : index
    %47 = vector.load %arg5[%c0_25, %c0_26, %c128] : memref<1x8x256xf32, #tpu.memory_space<vmem>>, vector<1x8x16xf32>
    %48 = vector.shape_cast %47 : vector<1x8x16xf32> to vector<8x16xf32>
    %49 = vector.shape_cast %46 : vector<8x16xf32> to vector<1x8x16xf32>
    tpu.vector_store %arg5[%c0_25, %c0_26, %c128], %49 {strides = array<i32>} : memref<1x8x256xf32, #tpu.memory_space<vmem>>, vector<1x8x16xf32>,
    %50 = vector.extract_strided_slice %13 {offsets = [0, 162], sizes = [8, 16], strides = [1, 1]} : vector<8x384xf32> to vector<8x16xf32>
    %c0_27 = arith.constant 0 : index
    %c0_28 = arith.constant 0 : index
    %c144 = arith.constant 144 : index
    %51 = vector.load %arg5[%c0_27, %c0_28, %c144] : memref<1x8x256xf32, #tpu.memory_space<vmem>>, vector<1x8x16xf32>
    %52 = vector.shape_cast %51 : vector<1x8x16xf32> to vector<8x16xf32>
    %53 = vector.shape_cast %50 : vector<8x16xf32> to vector<1x8x16xf32>
    tpu.vector_store %arg5[%c0_27, %c0_28, %c144], %53 {strides = array<i32>} : memref<1x8x256xf32, #tpu.memory_space<vmem>>, vector<1x8x16xf32>,
    %54 = vector.extract_strided_slice %13 {offsets = [0, 180], sizes = [8, 16], strides = [1, 1]} : vector<8x384xf32> to vector<8x16xf32>
    %c0_29 = arith.constant 0 : index
    %c0_30 = arith.constant 0 : index
    %c160 = arith.constant 160 : index
    %55 = vector.load %arg5[%c0_29, %c0_30, %c160] : memref<1x8x256xf32, #tpu.memory_space<vmem>>, vector<1x8x16xf32>
    %56 = vector.shape_cast %55 : vector<1x8x16xf32> to vector<8x16xf32>
    %57 = vector.shape_cast %54 : vector<8x16xf32> to vector<1x8x16xf32>
    tpu.vector_store %arg5[%c0_29, %c0_30, %c160], %57 {strides = array<i32>} : memref<1x8x256xf32, #tpu.memory_space<vmem>>, vector<1x8x16xf32>,
    %58 = vector.extract_strided_slice %13 {offsets = [0, 198], sizes = [8, 16], strides = [1, 1]} : vector<8x384xf32> to vector<8x16xf32>
    %c0_31 = arith.constant 0 : index
    %c0_32 = arith.constant 0 : index
    %c176 = arith.constant 176 : index
    %59 = vector.load %arg5[%c0_31, %c0_32, %c176] : memref<1x8x256xf32, #tpu.memory_space<vmem>>, vector<1x8x16xf32>
    %60 = vector.shape_cast %59 : vector<1x8x16xf32> to vector<8x16xf32>
    %61 = vector.shape_cast %58 : vector<8x16xf32> to vector<1x8x16xf32>
    tpu.vector_store %arg5[%c0_31, %c0_32, %c176], %61 {strides = array<i32>} : memref<1x8x256xf32, #tpu.memory_space<vmem>>, vector<1x8x16xf32>,
    %62 = vector.extract_strided_slice %13 {offsets = [0, 216], sizes = [8, 16], strides = [1, 1]} : vector<8x384xf32> to vector<8x16xf32>
    %c0_33 = arith.constant 0 : index
    %c0_34 = arith.constant 0 : index
    %c192 = arith.constant 192 : index
    %63 = vector.load %arg5[%c0_33, %c0_34, %c192] : memref<1x8x256xf32, #tpu.memory_space<vmem>>, vector<1x8x16xf32>
    %64 = vector.shape_cast %63 : vector<1x8x16xf32> to vector<8x16xf32>
    %65 = vector.shape_cast %62 : vector<8x16xf32> to vector<1x8x16xf32>
    tpu.vector_store %arg5[%c0_33, %c0_34, %c192], %65 {strides = array<i32>} : memref<1x8x256xf32, #tpu.memory_space<vmem>>, vector<1x8x16xf32>,
    %66 = vector.extract_strided_slice %13 {offsets = [0, 234], sizes = [8, 16], strides = [1, 1]} : vector<8x384xf32> to vector<8x16xf32>
    %c0_35 = arith.constant 0 : index
    %c0_36 = arith.constant 0 : index
    %c208 = arith.constant 208 : index
    %67 = vector.load %arg5[%c0_35, %c0_36, %c208] : memref<1x8x256xf32, #tpu.memory_space<vmem>>, vector<1x8x16xf32>
    %68 = vector.shape_cast %67 : vector<1x8x16xf32> to vector<8x16xf32>
    %69 = vector.shape_cast %66 : vector<8x16xf32> to vector<1x8x16xf32>
    tpu.vector_store %arg5[%c0_35, %c0_36, %c208], %69 {strides = array<i32>} : memref<1x8x256xf32, #tpu.memory_space<vmem>>, vector<1x8x16xf32>,
    %70 = vector.extract_strided_slice %13 {offsets = [0, 252], sizes = [8, 16], strides = [1, 1]} : vector<8x384xf32> to vector<8x16xf32>
    %c0_37 = arith.constant 0 : index
    %c0_38 = arith.constant 0 : index
    %c224 = arith.constant 224 : index
    %71 = vector.load %arg5[%c0_37, %c0_38, %c224] : memref<1x8x256xf32, #tpu.memory_space<vmem>>, vector<1x8x16xf32>
    %72 = vector.shape_cast %71 : vector<1x8x16xf32> to vector<8x16xf32>
    %73 = vector.shape_cast %70 : vector<8x16xf32> to vector<1x8x16xf32>
    tpu.vector_store %arg5[%c0_37, %c0_38, %c224], %73 {strides = array<i32>} : memref<1x8x256xf32, #tpu.memory_space<vmem>>, vector<1x8x16xf32>,
    %74 = vector.extract_strided_slice %13 {offsets = [0, 270], sizes = [8, 16], strides = [1, 1]} : vector<8x384xf32> to vector<8x16xf32>
    %c0_39 = arith.constant 0 : index
    %c0_40 = arith.constant 0 : index
    %c240 = arith.constant 240 : index
    %75 = vector.load %arg5[%c0_39, %c0_40, %c240] : memref<1x8x256xf32, #tpu.memory_space<vmem>>, vector<1x8x16xf32>
    %76 = vector.shape_cast %75 : vector<1x8x16xf32> to vector<8x16xf32>
    %77 = vector.shape_cast %74 : vector<8x16xf32> to vector<1x8x16xf32>
    tpu.vector_store %arg5[%c0_39, %c0_40, %c240], %77 {strides = array<i32>} : memref<1x8x256xf32, #tpu.memory_space<vmem>>, vector<1x8x16xf32>,
    return
  }
  func.func @transform_0(%arg0: i32, %arg1: i32) -> (i32, i32, i32, i32) {
    %c0_i32 = arith.constant 0 : i32
    %c0_i32_0 = arith.constant 0 : i32
    %c0_i32_1 = arith.constant 0 : i32
    return %arg0, %arg1, %c0_i32, %c0_i32_0 : i32, i32, i32, i32
  }
  func.func @transform_1(%arg0: i32, %arg1: i32) -> (i32, i32) {
    %c0_i32 = arith.constant 0 : i32
    %c0_i32_0 = arith.constant 0 : i32
    %c0_i32_1 = arith.constant 0 : i32
    return %c0_i32, %c0_i32_0 : i32, i32
  }
  func.func @transform_2(%arg0: i32, %arg1: i32) -> (i32, i32) {
    %c0_i32 = arith.constant 0 : i32
    %c0_i32_0 = arith.constant 0 : i32
    %c0_i32_1 = arith.constant 0 : i32
    return %c0_i32, %c0_i32_0 : i32, i32
  }
  func.func @transform_3(%arg0: i32, %arg1: i32) -> (i32, i32, i32) {
    %c0_i32 = arith.constant 0 : i32
    %c0_i32_0 = arith.constant 0 : i32
    return %arg0, %c0_i32, %arg1 : i32, i32, i32
  }
}

</mosaic_0001>

<llo_original>
// kernel: conv_block_forward.3
$region0: #{conv_block_forward.3}
  #allocation0 [shape = 'u32[]', space=smem, size = 0x4, offset = 0x4, fixed_abs, tag = 'smem constant byte address 0x4 - core index']
  #allocation1 [shape = 'u32[72,128]{1,0:T(1,128)}', space=vmem, size = 0x9000, scoped, tag = 'internal scratch']
  %s0 = inlined_call_operand.vmem [shape: bf16[2,1,8,384], index: 0, kind: input, shape index: {}]
  %s1 = inlined_call_operand.vmem [shape: f32[8,1], index: 1, kind: input, shape index: {}]
  %s2 = inlined_call_operand.vmem [shape: f32[8,1], index: 2, kind: input, shape index: {}]
  %s3 = inlined_call_operand.vmem [shape: f32[2,8,256], index: 3, kind: output, shape index: {}]
  %s4 = sld [smem:[#allocation0]]
  $region45: #{conv_block_forward.3} parent=0
    _
  %s6 = ssub.s32 1, %s4
  %s7 = scalar_select 0, %s6, %s4
  loop: start=0, step=1, limit=4
  $region2: #{conv_block_forward.3} parent=0 // loop_pre_header
    _
  $region3: #{conv_block_forward.3} parent=0 // loop_header
    %s9 = sphi 0, %s13
    %p10 = scmp.ge.s32.totalorder %s9, 4
    %s16 = sphi 0, %s28
    %s17 = sphi 0, %s24
    %s18 = sphi 0, %s16
    %s19 = sphi 0, %s17
    %s20 = sphi 0, %s18
    %s21 = sphi 0, %s19
    %s33 = sphi 0, %s35
    %s36 = sphi 0, %s33
    %s37 = sphi 0, %s36
    %s53 = sphi 0, %s37
    %s57 = sphi 0, %s57
    %s59 = sphi 0, %s57
    %s60 = sphi 0, %s59
    %s74 = sphi 0, %s60
    %s78 = sphi 0, %s78
    %s80 = sphi 0, %s78
    %s81 = sphi 0, %s80
    %s95 = sphi 0, %s81
    %s103 = sphi 0, %s105
    %s106 = sphi 0, %s103
    %s107 = sphi 0, %s106
    %s123 = sphi 0, %s107
  $region4: #{conv_block_forward.3} parent=0 // loop_header_branch
    %12 = sbr.rel (%p10) target = $region8
  $region5: #{conv_block_forward.3} parent=0 // loop_body
    %s14 = ssub.s32 %s9, 1
    %s15 = ssub.s32 %s9, 2
    %s22 = sadd.s32 1, %s17
    %p23 = scmp.ge.s32.totalorder %s22, 1
    %s24 = scalar_select %p23, 0, %s22
    %s25 = sadd.s32 1, %s16
    %s26 = scalar_select %p23, %s25, %s16
    %p27 = scmp.ge.s32.totalorder %s26, 2
    %s28 = scalar_select %p27, 0, %s26
    %s29 = ssub.s32 %s16, %s28
    %s30 = ssub.s32 %s17, %s24
    %s31 = sor.u32 %s29, %s30
    %p32 = scmp.eq.s32.totalorder %s31, 0
    %s34 = sadd.s32 %s33, 1
    %s35 = scalar_select %p32, %s33, %s34
    %p38 = pneg %p32
    %p39 = scmp.eq.s32.totalorder %s9, 1
    %p40 = por %p38, %p39
    %p41 = scmp.ne.s32.totalorder %s33, %s36
    %p42 = scmp.eq.s32.totalorder %s9, 0
    %p43 = por %p41, %p42
    %p44 = scmp.ne.s32.totalorder %s33, %s36
    %p45 = scmp.eq.s32.totalorder %s14, 1
    %p46 = por %p44, %p45
    %p47 = scmp.ne.s32.totalorder %s36, %s37
    %p48 = scmp.eq.s32.totalorder %s14, 0
    %p49 = por %p47, %p48
    %p50 = scmp.ne.s32.totalorder %s36, %s37
    %p51 = scmp.eq.s32.totalorder %s15, 1
    %p52 = por %p50, %p51
    %p54 = scmp.ne.s32.totalorder %s37, %s53
    %p55 = scmp.eq.s32.totalorder %s15, 0
    %p56 = por %p54, %p55
    %s58 = sadd.s32 %s57, 1
    %p61 = scmp.eq.s32.totalorder %s9, 1
    %p62 = scmp.ne.s32.totalorder %s57, %s59
    %p63 = scmp.eq.s32.totalorder %s9, 0
    %p64 = por %p62, %p63
    %p65 = scmp.ne.s32.totalorder %s57, %s59
    %p66 = scmp.eq.s32.totalorder %s14, 1
    %p67 = por %p65, %p66
    %p68 = scmp.ne.s32.totalorder %s59, %s60
    %p69 = scmp.eq.s32.totalorder %s14, 0
    %p70 = por %p68, %p69
    %p71 = scmp.ne.s32.totalorder %s59, %s60
    %p72 = scmp.eq.s32.totalorder %s15, 1
    %p73 = por %p71, %p72
    %p75 = scmp.ne.s32.totalorder %s60, %s74
    %p76 = scmp.eq.s32.totalorder %s15, 0
    %p77 = por %p75, %p76
    %s79 = sadd.s32 %s78, 1
    %p82 = scmp.eq.s32.totalorder %s9, 1
    %p83 = scmp.ne.s32.totalorder %s78, %s80
    %p84 = scmp.eq.s32.totalorder %s9, 0
    %p85 = por %p83, %p84
    %p86 = scmp.ne.s32.totalorder %s78, %s80
    %p87 = scmp.eq.s32.totalorder %s14, 1
    %p88 = por %p86, %p87
    %p89 = scmp.ne.s32.totalorder %s80, %s81
    %p90 = scmp.eq.s32.totalorder %s14, 0
    %p91 = por %p89, %p90
    %p92 = scmp.ne.s32.totalorder %s80, %s81
    %p93 = scmp.eq.s32.totalorder %s15, 1
    %p94 = por %p92, %p93
    %p96 = scmp.ne.s32.totalorder %s81, %s95
    %p97 = scmp.eq.s32.totalorder %s15, 0
    %p98 = por %p96, %p97
    %s99 = ssub.s32 %s16, %s28
    %s100 = ssub.s32 %s17, %s24
    %s101 = sor.u32 %s99, %s100
    %p102 = scmp.eq.s32.totalorder %s101, 0
    %s104 = sadd.s32 %s103, 1
    %s105 = scalar_select %p102, %s103, %s104
    %p108 = pneg %p102
    %p109 = scmp.eq.s32.totalorder %s9, 1
    %p110 = por %p108, %p109
    %p111 = scmp.ne.s32.totalorder %s103, %s106
    %p112 = scmp.eq.s32.totalorder %s9, 0
    %p113 = por %p111, %p112
    %p114 = scmp.ne.s32.totalorder %s103, %s106
    %p115 = scmp.eq.s32.totalorder %s14, 1
    %p116 = por %p114, %p115
    %p117 = scmp.ne.s32.totalorder %s106, %s107
    %p118 = scmp.eq.s32.totalorder %s14, 0
    %p119 = por %p117, %p118
    %p120 = scmp.ne.s32.totalorder %s106, %s107
    %p121 = scmp.eq.s32.totalorder %s15, 1
    %p122 = por %p120, %p121
    %p124 = scmp.ne.s32.totalorder %s107, %s123
    %p125 = scmp.eq.s32.totalorder %s15, 0
    %p126 = por %p124, %p125
    %p127 = scmp.le.s32.totalorder 1, %s9
    %p128 = scmp.lt.s32.totalorder %s9, 3
    %p129 = pnand %p127, %p128
    %p130 = pneg %p129
    // Predicated region
    $region9: #{conv_block_forward.3} parent=5 // pred_check
      _
    $region10: #{conv_block_forward.3} parent=5 // pred_check_branch
      %132 = sbr.rel (%p129) target = $region12
    $region11: #{conv_block_forward.3} parent=5 // pred_region
      %s133 = ssub.s32 %s9, 1
      // Predicated region
      $region13: #{conv_block_forward.3} parent=11 // pred_check
        %p134 = pneg %p70
      $region14: #{conv_block_forward.3} parent=11 // pred_check_branch
        %136 = sbr.rel (%p134) target = $region16
      $region15: #{conv_block_forward.3} parent=11 // pred_region
        _
      $region16: #{conv_block_forward.3} parent=11 // pred_fallthru
        _
      // Predicated region
      $region17: #{conv_block_forward.3} parent=11 // pred_check
        %p137 = pneg %p91
      $region18: #{conv_block_forward.3} parent=11 // pred_check_branch
        %139 = sbr.rel (%p137) target = $region20
      $region19: #{conv_block_forward.3} parent=11 // pred_region
        _
      $region20: #{conv_block_forward.3} parent=11 // pred_fallthru
        _
    $region12: #{conv_block_forward.3} parent=5 // pred_fallthru
      _
    %p140 = scmp.lt.s32.totalorder %s9, 2
    // Predicated region
    $region21: #{conv_block_forward.3} parent=5 // pred_check
      %p141 = pneg %p140
    $region22: #{conv_block_forward.3} parent=5 // pred_check_branch
      %143 = sbr.rel (%p141) target = $region24
    $region23: #{conv_block_forward.3} parent=5 // pred_region
      // Predicated region
      $region25: #{conv_block_forward.3} parent=23 // pred_check
        %p144 = pneg %p43
      $region26: #{conv_block_forward.3} parent=23 // pred_check_branch
        %146 = sbr.rel (%p144) target = $region28
      $region27: #{conv_block_forward.3} parent=23 // pred_region
        %p147 = scmp.lt.s32.totalorder %s16, 1
        %s148 = scalar_select %p147, %s16, 1
        %p149 = scmp.lt.s32.totalorder %s17, 0
        %s150 = scalar_select %p149, %s17, 0
        %s151 = smul.addr %s150, 3
        %s152 = smul.addr %s148, 3
        %s153 = sadd.s32 %s151, %s152
        %s154 = smul.addr %s153, 4
        %s155 = scalar_lea.vmem %s0, %s154
      $region28: #{conv_block_forward.3} parent=23 // pred_fallthru
        _
    $region24: #{conv_block_forward.3} parent=5 // pred_fallthru
      _
    %p156 = scmp.le.s32.totalorder 1, %s9
    %p157 = scmp.lt.s32.totalorder %s9, 3
    %p158 = pnand %p156, %p157
    %p159 = pneg %p158
    // Predicated region
    $region29: #{conv_block_forward.3} parent=5 // pred_check
      _
    $region30: #{conv_block_forward.3} parent=5 // pred_check_branch
      %161 = sbr.rel (%p158) target = $region32
    $region31: #{conv_block_forward.3} parent=5 // pred_region
      %s162 = ssub.s32 %s9, 1
      %p163 = scmp.lt.s32.totalorder %s18, 1
      %s164 = scalar_select %p163, %s18, 1
      %p165 = scmp.lt.s32.totalorder %s19, 0
      %s166 = scalar_select %p165, %s19, 0
      %s167 = smul.addr %s166, 3
      %s168 = smul.addr %s164, 3
      %s169 = sadd.s32 %s167, %s168
      %s170 = smul.addr %s169, 4
      %s171 = scalar_lea.vmem %s0, %s170
      %p172 = pneg %p49
      %p173 = pneg %p46
      %p174 = pneg %p70
      %p175 = pneg %p67
      %p176 = pneg %p91
      %p177 = pneg %p88
      %p178 = pneg %p119
      %p179 = pneg %p116
      %s180 = smul.u32 2, %s19
      %p181 = scmp.lt.s32.totalorder %s18, 1
      %s182 = scalar_select %p181, %s18, 1
      %p183 = scmp.lt.s32.totalorder %s180, 1
      %s184 = scalar_select %p183, %s180, 1
      %s185 = smul.addr %s182, 2
      %s186 = sadd.s32 %s184, %s185
      %s187 = smul.addr %s186, 8
      %s188 = scalar_lea.vmem %s3, %s187
      %p189 = scmp.lt.s32.totalorder %s18, 1
      %s190 = scalar_select %p189, %s18, 1
      %p191 = scmp.lt.s32.totalorder %s19, 0
      %s192 = scalar_select %p191, %s19, 0
      %s193 = smul.addr %s192, 3
      %s194 = smul.addr %s190, 3
      %s195 = sadd.s32 %s193, %s194
      %s196 = smul.addr %s195, 4
      %s197 = scalar_lea.vmem %s0, %s196
      %s198 = smul.u32 2, %s19
      %p199 = scmp.lt.s32.totalorder %s18, 1
      %s200 = scalar_select %p199, %s18, 1
      %p201 = scmp.lt.s32.totalorder %s198, 1
      %s202 = scalar_select %p201, %s198, 1
      %s203 = smul.addr %s200, 2
      %s204 = sadd.s32 %s202, %s203
      %s205 = smul.addr %s204, 8
      %s206 = scalar_lea.vmem %s3, %s205
      %s207 = smul.u32 2, %s19
      %v208 = vld [vmem:[%s197] sm:$0xff]
      %v209 = vld [vmem:[%s197 + $0x8] sm:$0xf]
      %v210 = vunpack.c.l.bf16 %v208
      %v211 = vunpack.c.h.bf16 %v208
      %v212 = vunpack.c.l.bf16 %v209
      %v213 = vld [vmem:[%s1] sm:$0xff]
      %215 = vset.pattern.permute.xlu0 0
      %216 = vperm.xlu0 %215, %v213
      %v217 = vpop.permute.xlu0 %216
      %v219 = vmul.f32 %v210, %v217
      %v220 = vmul.f32 %v211, %v217
      %v221 = vmul.f32 %v212, %v217
      %v222 = vld [vmem:[%s2] sm:$0xff]
      %224 = vset.pattern.permute.xlu0 0
      %225 = vperm.xlu0 %224, %v222
      %v226 = vpop.permute.xlu0 %225
      %v228 = vadd.f32 %v219, %v226
      %v229 = vadd.f32 %v220, %v226
      %v230 = vadd.f32 %v221, %v226
      %vm231 = vcmp.ge.f32.partialorder %v228, 0.0
      %vm232 = vcmp.ge.f32.partialorder %v229, 0.0
      %vm233 = vcmp.ge.f32.partialorder %v230, 0.0
      %v234 = vmul.f32 %v228, 0.2
      %v235 = vmul.f32 %v229, 0.2
      %v236 = vmul.f32 %v230, 0.2
      %v237 = vsel %vm231, %v228, %v234
      %v238 = vsel %vm232, %v229, %v235
      %v239 = vsel %vm233, %v230, %v236
      %vm240 = vcmask 130048
      %241 = vst.msk [vmem:[%s206] sm:$0xff] %vm240, %v237
      %243 = vrot.lane.b32.xlu0 %v237, 126
      %v244 = vpop.permute.xlu0 %243
      %vm246 = vcmask 261248
      %247 = vst.msk [vmem:[%s206] sm:$0xff] %vm246, %v244
      %248 = vrot.lane.b32.xlu0 %v237, 124
      %v249 = vpop.permute.xlu0 %248
      %vm251 = vcmask 392448
      %252 = vst.msk [vmem:[%s206] sm:$0xff] %vm251, %v249
      %253 = vrot.lane.b32.xlu0 %v237, 122
      %v254 = vpop.permute.xlu0 %253
      %vm256 = vcmask 523648
      %257 = vst.msk [vmem:[%s206] sm:$0xff] %vm256, %v254
      %258 = vrot.lane.b32.xlu0 %v237, 120
      %v259 = vpop.permute.xlu0 %258
      %vm261 = vcmask 654848
      %262 = vst.msk [vmem:[%s206] sm:$0xff] %vm261, %v259
      %263 = vrot.lane.b32.xlu0 %v237, 118
      %v264 = vpop.permute.xlu0 %263
      %vm266 = vcmask 786048
      %267 = vst.msk [vmem:[%s206] sm:$0xff] %vm266, %v264
      %268 = vrot.lane.b32.xlu0 %v237, 116
      %v269 = vpop.permute.xlu0 %268
      %vm271 = vcmask 917248
      %272 = vst.msk [vmem:[%s206] sm:$0xff] %vm271, %v269
      %274 = vrot.lane.b32.xlu0 %v237, 114
      %v275 = vpop.permute.xlu0 %274
      %276 = vrot.lane.b32.xlu0 %v238, 114
      %v277 = vpop.permute.xlu0 %276
      %vm278 = vcmask 932864
      %v279 = vsel %vm278, %v275, %v277
      %vm281 = vcmask 1048448
      %282 = vst.msk [vmem:[%s206] sm:$0xff] %vm281, %v279
      %283 = vrot.lane.b32.xlu0 %v238, 112
      %v284 = vpop.permute.xlu0 %283
      %286 = vst.msk [vmem:[%s206 + $0x8] sm:$0xff] %vm240, %v284
      %287 = vrot.lane.b32.xlu0 %v238, 110
      %v288 = vpop.permute.xlu0 %287
      %290 = vst.msk [vmem:[%s206 + $0x8] sm:$0xff] %vm246, %v288
      %291 = vrot.lane.b32.xlu0 %v238, 108
      %v292 = vpop.permute.xlu0 %291
      %294 = vst.msk [vmem:[%s206 + $0x8] sm:$0xff] %vm251, %v292
      %295 = vrot.lane.b32.xlu0 %v238, 106
      %v296 = vpop.permute.xlu0 %295
      %298 = vst.msk [vmem:[%s206 + $0x8] sm:$0xff] %vm256, %v296
      %299 = vrot.lane.b32.xlu0 %v238, 104
      %v300 = vpop.permute.xlu0 %299
      %302 = vst.msk [vmem:[%s206 + $0x8] sm:$0xff] %vm261, %v300
      %303 = vrot.lane.b32.xlu0 %v238, 102
      %v304 = vpop.permute.xlu0 %303
      %306 = vst.msk [vmem:[%s206 + $0x8] sm:$0xff] %vm266, %v304
      %308 = vrot.lane.b32.xlu0 %v238, 100
      %v309 = vpop.permute.xlu0 %308
      %310 = vrot.lane.b32.xlu0 %v239, 100
      %v311 = vpop.permute.xlu0 %310
      %vm312 = vcmask 818176
      %v313 = vsel %vm312, %v309, %v311
      %315 = vst.msk [vmem:[%s206 + $0x8] sm:$0xff] %vm271, %v313
      %316 = vrot.lane.b32.xlu0 %v239, 98
      %v317 = vpop.permute.xlu0 %316
      %319 = vst.msk [vmem:[%s206 + $0x8] sm:$0xff] %vm281, %v317
      %s320 = smul.u32 2, %s19
      %p321 = scmp.lt.s32.totalorder %s18, 1
      %s322 = scalar_select %p321, %s18, 1
      %p323 = scmp.lt.s32.totalorder %s320, 1
      %s324 = scalar_select %p323, %s320, 1
      %s325 = smul.addr %s322, 2
      %s326 = sadd.s32 %s324, %s325
      %s327 = smul.addr %s326, 8
      %s328 = scalar_lea.vmem %s3, %s327
      // Predicated region
      $region33: #{conv_block_forward.3} parent=31 // pred_check
        %p329 = pneg %p116
      $region34: #{conv_block_forward.3} parent=31 // pred_check_branch
        %331 = sbr.rel (%p329) target = $region36
      $region35: #{conv_block_forward.3} parent=31 // pred_region
        %s332 = smul.u32 2, %s19
      $region36: #{conv_block_forward.3} parent=31 // pred_fallthru
        _
    $region32: #{conv_block_forward.3} parent=5 // pred_fallthru
      _
    %p333 = scmp.le.s32.totalorder 2, %s9
    // Predicated region
    $region37: #{conv_block_forward.3} parent=5 // pred_check
      %p334 = pneg %p333
    $region38: #{conv_block_forward.3} parent=5 // pred_check_branch
      %336 = sbr.rel (%p334) target = $region40
    $region39: #{conv_block_forward.3} parent=5 // pred_region
      %s337 = ssub.s32 %s9, 2
      // Predicated region
      $region41: #{conv_block_forward.3} parent=39 // pred_check
        %p338 = pneg %p122
      $region42: #{conv_block_forward.3} parent=39 // pred_check_branch
        %340 = sbr.rel (%p338) target = $region44
      $region43: #{conv_block_forward.3} parent=39 // pred_region
        %s341 = smul.u32 2, %s21
        %p342 = scmp.lt.s32.totalorder %s20, 1
        %s343 = scalar_select %p342, %s20, 1
        %p344 = scmp.lt.s32.totalorder %s341, 1
        %s345 = scalar_select %p344, %s341, 1
        %s346 = smul.addr %s343, 2
        %s347 = sadd.s32 %s345, %s346
        %s348 = smul.addr %s347, 8
        %s349 = scalar_lea.vmem %s3, %s348
      $region44: #{conv_block_forward.3} parent=39 // pred_fallthru
        _
    $region40: #{conv_block_forward.3} parent=5 // pred_fallthru
      _
  $region6: #{conv_block_forward.3} parent=0 // loop_footer
    %s13 = sadd.s32 1, %s9
  $region7: #{conv_block_forward.3} parent=0 // loop_footer_branch
    %8 = sbr.rel target = $region3
  $region8: #{conv_block_forward.3} parent=0 // loop_exit
    _

// kernel: conv_block_forward.2
$region0: #{conv_block_forward.2}
  #allocation0 [shape = 'u32[]', space=smem, size = 0x4, offset = 0x4, fixed_abs, tag = 'smem constant byte address 0x4 - core index']
  #allocation1 [shape = 'u32[72,128]{1,0:T(1,128)}', space=vmem, size = 0x9000, scoped, tag = 'internal scratch']
  #allocation2 [shape = 'bf16[144,384]{1,0:T(8,128)(2,1)}', space=vmem, size = 0x1b000, scoped, tag = 'scratch operand']
  %s0 = inlined_call_operand.vmem [shape: bf16[2,1,16,432], index: 0, kind: input, shape index: {}]
  %s1 = inlined_call_operand.vmem [shape: bf16[8,144], index: 1, kind: input, shape index: {}]
  %s2 = inlined_call_operand.vmem [shape: bf16[2,1,8,384], index: 2, kind: output, shape index: {0}]
  %s3 = inlined_call_operand.vmem [shape: f32[2,1,8,2], index: 3, kind: output, shape index: {1}]
  %4 = xla_tuple %s2, %s3
  %s5 = sld [smem:[#allocation0]]
  $region49: #{conv_block_forward.2} parent=0
    _
  %s7 = ssub.s32 1, %s5
  %s8 = scalar_select 0, %s7, %s5
  loop: start=0, step=1, limit=4
  $region2: #{conv_block_forward.2} parent=0 // loop_pre_header
    _
  $region3: #{conv_block_forward.2} parent=0 // loop_header
    %s10 = sphi 0, %s14
    %p11 = scmp.ge.s32.totalorder %s10, 4
    %s17 = sphi 0, %s29
    %s18 = sphi 0, %s25
    %s19 = sphi 0, %s17
    %s20 = sphi 0, %s18
    %s21 = sphi 0, %s19
    %s22 = sphi 0, %s20
    %s34 = sphi 0, %s36
    %s37 = sphi 0, %s34
    %s38 = sphi 0, %s37
    %s54 = sphi 0, %s38
    %s58 = sphi 0, %s58
    %s60 = sphi 0, %s58
    %s61 = sphi 0, %s60
    %s75 = sphi 0, %s61
    %s83 = sphi 0, %s85
    %s86 = sphi 0, %s83
    %s87 = sphi 0, %s86
    %s103 = sphi 0, %s87
    %s111 = sphi 0, %s113
    %s114 = sphi 0, %s111
    %s115 = sphi 0, %s114
    %s131 = sphi 0, %s115
  $region4: #{conv_block_forward.2} parent=0 // loop_header_branch
    %13 = sbr.rel (%p11) target = $region8
  $region5: #{conv_block_forward.2} parent=0 // loop_body
    %s15 = ssub.s32 %s10, 1
    %s16 = ssub.s32 %s10, 2
    %s23 = sadd.s32 1, %s18
    %p24 = scmp.ge.s32.totalorder %s23, 1
    %s25 = scalar_select %p24, 0, %s23
    %s26 = sadd.s32 1, %s17
    %s27 = scalar_select %p24, %s26, %s17
    %p28 = scmp.ge.s32.totalorder %s27, 2
    %s29 = scalar_select %p28, 0, %s27
    %s30 = ssub.s32 %s17, %s29
    %s31 = ssub.s32 %s18, %s25
    %s32 = sor.u32 %s30, %s31
    %p33 = scmp.eq.s32.totalorder %s32, 0
    %s35 = sadd.s32 %s34, 1
    %s36 = scalar_select %p33, %s34, %s35
    %p39 = pneg %p33
    %p40 = scmp.eq.s32.totalorder %s10, 1
    %p41 = por %p39, %p40
    %p42 = scmp.ne.s32.totalorder %s34, %s37
    %p43 = scmp.eq.s32.totalorder %s10, 0
    %p44 = por %p42, %p43
    %p45 = scmp.ne.s32.totalorder %s34, %s37
    %p46 = scmp.eq.s32.totalorder %s15, 1
    %p47 = por %p45, %p46
    %p48 = scmp.ne.s32.totalorder %s37, %s38
    %p49 = scmp.eq.s32.totalorder %s15, 0
    %p50 = por %p48, %p49
    %p51 = scmp.ne.s32.totalorder %s37, %s38
    %p52 = scmp.eq.s32.totalorder %s16, 1
    %p53 = por %p51, %p52
    %p55 = scmp.ne.s32.totalorder %s38, %s54
    %p56 = scmp.eq.s32.totalorder %s16, 0
    %p57 = por %p55, %p56
    %s59 = sadd.s32 %s58, 1
    %p62 = scmp.eq.s32.totalorder %s10, 1
    %p63 = scmp.ne.s32.totalorder %s58, %s60
    %p64 = scmp.eq.s32.totalorder %s10, 0
    %p65 = por %p63, %p64
    %p66 = scmp.ne.s32.totalorder %s58, %s60
    %p67 = scmp.eq.s32.totalorder %s15, 1
    %p68 = por %p66, %p67
    %p69 = scmp.ne.s32.totalorder %s60, %s61
    %p70 = scmp.eq.s32.totalorder %s15, 0
    %p71 = por %p69, %p70
    %p72 = scmp.ne.s32.totalorder %s60, %s61
    %p73 = scmp.eq.s32.totalorder %s16, 1
    %p74 = por %p72, %p73
    %p76 = scmp.ne.s32.totalorder %s61, %s75
    %p77 = scmp.eq.s32.totalorder %s16, 0
    %p78 = por %p76, %p77
    %s79 = ssub.s32 %s17, %s29
    %s80 = ssub.s32 %s18, %s25
    %s81 = sor.u32 %s79, %s80
    %p82 = scmp.eq.s32.totalorder %s81, 0
    %s84 = sadd.s32 %s83, 1
    %s85 = scalar_select %p82, %s83, %s84
    %p88 = pneg %p82
    %p89 = scmp.eq.s32.totalorder %s10, 1
    %p90 = por %p88, %p89
    %p91 = scmp.ne.s32.totalorder %s83, %s86
    %p92 = scmp.eq.s32.totalorder %s10, 0
    %p93 = por %p91, %p92
    %p94 = scmp.ne.s32.totalorder %s83, %s86
    %p95 = scmp.eq.s32.totalorder %s15, 1
    %p96 = por %p94, %p95
    %p97 = scmp.ne.s32.totalorder %s86, %s87
    %p98 = scmp.eq.s32.totalorder %s15, 0
    %p99 = por %p97, %p98
    %p100 = scmp.ne.s32.totalorder %s86, %s87
    %p101 = scmp.eq.s32.totalorder %s16, 1
    %p102 = por %p100, %p101
    %p104 = scmp.ne.s32.totalorder %s87, %s103
    %p105 = scmp.eq.s32.totalorder %s16, 0
    %p106 = por %p104, %p105
    %s107 = ssub.s32 %s17, %s29
    %s108 = ssub.s32 %s18, %s25
    %s109 = sor.u32 %s107, %s108
    %p110 = scmp.eq.s32.totalorder %s109, 0
    %s112 = sadd.s32 %s111, 1
    %s113 = scalar_select %p110, %s111, %s112
    %p116 = pneg %p110
    %p117 = scmp.eq.s32.totalorder %s10, 1
    %p118 = por %p116, %p117
    %p119 = scmp.ne.s32.totalorder %s111, %s114
    %p120 = scmp.eq.s32.totalorder %s10, 0
    %p121 = por %p119, %p120
    %p122 = scmp.ne.s32.totalorder %s111, %s114
    %p123 = scmp.eq.s32.totalorder %s15, 1
    %p124 = por %p122, %p123
    %p125 = scmp.ne.s32.totalorder %s114, %s115
    %p126 = scmp.eq.s32.totalorder %s15, 0
    %p127 = por %p125, %p126
    %p128 = scmp.ne.s32.totalorder %s114, %s115
    %p129 = scmp.eq.s32.totalorder %s16, 1
    %p130 = por %p128, %p129
    %p132 = scmp.ne.s32.totalorder %s115, %s131
    %p133 = scmp.eq.s32.totalorder %s16, 0
    %p134 = por %p132, %p133
    %p135 = scmp.le.s32.totalorder 1, %s10
    %p136 = scmp.lt.s32.totalorder %s10, 3
    %p137 = pnand %p135, %p136
    %p138 = pneg %p137
    // Predicated region
    $region9: #{conv_block_forward.2} parent=5 // pred_check
      _
    $region10: #{conv_block_forward.2} parent=5 // pred_check_branch
      %140 = sbr.rel (%p137) target = $region12
    $region11: #{conv_block_forward.2} parent=5 // pred_region
      %s141 = ssub.s32 %s10, 1
      // Predicated region
      $region13: #{conv_block_forward.2} parent=11 // pred_check
        %p142 = pneg %p71
      $region14: #{conv_block_forward.2} parent=11 // pred_check_branch
        %144 = sbr.rel (%p142) target = $region16
      $region15: #{conv_block_forward.2} parent=11 // pred_region
        _
      $region16: #{conv_block_forward.2} parent=11 // pred_fallthru
        _
    $region12: #{conv_block_forward.2} parent=5 // pred_fallthru
      _
    %p145 = scmp.lt.s32.totalorder %s10, 2
    // Predicated region
    $region17: #{conv_block_forward.2} parent=5 // pred_check
      %p146 = pneg %p145
    $region18: #{conv_block_forward.2} parent=5 // pred_check_branch
      %148 = sbr.rel (%p146) target = $region20
    $region19: #{conv_block_forward.2} parent=5 // pred_region
      // Predicated region
      $region21: #{conv_block_forward.2} parent=19 // pred_check
        %p149 = pneg %p44
      $region22: #{conv_block_forward.2} parent=19 // pred_check_branch
        %151 = sbr.rel (%p149) target = $region24
      $region23: #{conv_block_forward.2} parent=19 // pred_region
        %p152 = scmp.lt.s32.totalorder %s17, 1
        %s153 = scalar_select %p152, %s17, 1
        %p154 = scmp.lt.s32.totalorder %s18, 0
        %s155 = scalar_select %p154, %s18, 0
        %s156 = smul.addr %s155, 8
        %s157 = smul.addr %s153, 8
        %s158 = sadd.s32 %s156, %s157
        %s159 = smul.addr %s158, 4
        %s160 = scalar_lea.vmem %s0, %s159
      $region24: #{conv_block_forward.2} parent=19 // pred_fallthru
        _
    $region20: #{conv_block_forward.2} parent=5 // pred_fallthru
      _
    %p161 = scmp.le.s32.totalorder 1, %s10
    %p162 = scmp.lt.s32.totalorder %s10, 3
    %p163 = pnand %p161, %p162
    %p164 = pneg %p163
    // Predicated region
    $region25: #{conv_block_forward.2} parent=5 // pred_check
      _
    $region26: #{conv_block_forward.2} parent=5 // pred_check_branch
      %166 = sbr.rel (%p163) target = $region28
    $region27: #{conv_block_forward.2} parent=5 // pred_region
      %s167 = ssub.s32 %s10, 1
      %p168 = scmp.lt.s32.totalorder %s19, 1
      %s169 = scalar_select %p168, %s19, 1
      %p170 = scmp.lt.s32.totalorder %s20, 0
      %s171 = scalar_select %p170, %s20, 0
      %s172 = smul.addr %s171, 8
      %s173 = smul.addr %s169, 8
      %s174 = sadd.s32 %s172, %s173
      %s175 = smul.addr %s174, 4
      %s176 = scalar_lea.vmem %s0, %s175
      %p177 = pneg %p50
      %p178 = pneg %p47
      %p179 = pneg %p71
      %p180 = pneg %p68
      %p181 = pneg %p99
      %p182 = pneg %p96
      %p183 = scmp.lt.s32.totalorder %s19, 1
      %s184 = scalar_select %p183, %s19, 1
      %p185 = scmp.lt.s32.totalorder %s20, 0
      %s186 = scalar_select %p185, %s20, 0
      %s187 = smul.addr %s186, 3
      %s188 = smul.addr %s184, 3
      %s189 = sadd.s32 %s187, %s188
      %s190 = smul.addr %s189, 4
      %s191 = scalar_lea.vmem %s2, %s190
      %p192 = pneg %p127
      %p193 = pneg %p124
      %p194 = scmp.lt.s32.totalorder %s19, 1
      %s195 = scalar_select %p194, %s19, 1
      %p196 = scmp.lt.s32.totalorder %s20, 0
      %s197 = scalar_select %p196, %s20, 0
      %s198 = sadd.s32 %s197, %s195
      %s199 = smul.addr %s198, 8
      %s200 = scalar_lea.vmem %s3, %s199
      %p201 = scmp.lt.s32.totalorder %s19, 1
      %s202 = scalar_select %p201, %s19, 1
      %p203 = scmp.lt.s32.totalorder %s20, 0
      %s204 = scalar_select %p203, %s20, 0
      %s205 = smul.addr %s204, 8
      %s206 = smul.addr %s202, 8
      %s207 = sadd.s32 %s205, %s206
      %s208 = smul.addr %s207, 4
      %s209 = scalar_lea.vmem %s0, %s208
      %p210 = scmp.lt.s32.totalorder %s19, 1
      %s211 = scalar_select %p210, %s19, 1
      %p212 = scmp.lt.s32.totalorder %s20, 0
      %s213 = scalar_select %p212, %s20, 0
      %s214 = smul.addr %s213, 3
      %s215 = smul.addr %s211, 3
      %s216 = sadd.s32 %s214, %s215
      %s217 = smul.addr %s216, 4
      %s218 = scalar_lea.vmem %s2, %s217
      %p219 = scmp.lt.s32.totalorder %s19, 1
      %s220 = scalar_select %p219, %s19, 1
      %p221 = scmp.lt.s32.totalorder %s20, 0
      %s222 = scalar_select %p221, %s20, 0
      %s223 = sadd.s32 %s222, %s220
      %s224 = smul.addr %s223, 8
      %s225 = scalar_lea.vmem %s3, %s224
      %v227 = vld [vmem:[%s209] sm:$0xff]
      %v228 = vld [vmem:[%s209 + $0x8] sm:$0xf]
      %v229 = vld [vmem:[%s209 + $0x10] sm:$0xff]
      %v230 = vld [vmem:[%s209 + $0x18] sm:$0xf]
      %231 = vst [vmem:[#allocation2] sm:$0xff] %v227
      %232 = vst [vmem:[#allocation2 + $0x8] sm:$0xf] %v228
      %233 = vst [vmem:[#allocation2 + $0xc] sm:$0xff] %v229
      %234 = vst [vmem:[#allocation2 + $0x14] sm:$0xf] %v230
      %v235 = vld [vmem:[%s209] sm:$0xff]
      %v236 = vld [vmem:[%s209 + $0x8] sm:$0xff]
      %v237 = vld [vmem:[%s209 + $0x10] sm:$0xff]
      %v238 = vld [vmem:[%s209 + $0x18] sm:$0xff]
      %243 = vrot.lane.b32.xlu0 %v235, 127
      %v244 = vpop.permute.xlu0 %243
      %245 = vrot.lane.b32.xlu0 %v236, 127
      %v246 = vpop.permute.xlu0 %245
      %247 = vrot.lane.b32.xlu0 %v237, 127
      %v248 = vpop.permute.xlu0 %247
      %249 = vrot.lane.b32.xlu0 %v238, 127
      %v250 = vpop.permute.xlu0 %249
      %v251 = vrot.slane %v244, 4
      %v252 = vrot.slane %v246, 4
      %v253 = vrot.slane %v248, 4
      %v254 = vrot.slane %v250, 4
      %vm255 = vcmask 1043456
      %v256 = vsel %vm255, %v251, %v252
      %vm257 = vcmask 1039360
      %v258 = vsel %vm257, %v244, %v256
      %v259 = vsel %vm257, %v246, %v252
      %v260 = vsel %vm255, %v253, %v254
      %v261 = vsel %vm257, %v248, %v260
      %v262 = vsel %vm257, %v250, %v254
      %267 = vst [vmem:[#allocation2 + $0x18] sm:$0xff] %v258
      %268 = vst [vmem:[#allocation2 + $0x20] sm:$0xf] %v259
      %269 = vst [vmem:[#allocation2 + $0x24] sm:$0xff] %v261
      %270 = vst [vmem:[#allocation2 + $0x2c] sm:$0xf] %v262
      %v271 = vld [vmem:[%s209] sm:$0xff]
      %v272 = vld [vmem:[%s209 + $0x8] sm:$0xff]
      %v273 = vld [vmem:[%s209 + $0x10] sm:$0xff]
      %v274 = vld [vmem:[%s209 + $0x18] sm:$0xff]
      %279 = vrot.lane.b32.xlu0 %v271, 126
      %v280 = vpop.permute.xlu0 %279
      %281 = vrot.lane.b32.xlu0 %v272, 126
      %v282 = vpop.permute.xlu0 %281
      %283 = vrot.lane.b32.xlu0 %v273, 126
      %v284 = vpop.permute.xlu0 %283
      %285 = vrot.lane.b32.xlu0 %v274, 126
      %v286 = vpop.permute.xlu0 %285
      %v287 = vrot.slane %v280, 4
      %v288 = vrot.slane %v282, 4
      %v289 = vrot.slane %v284, 4
      %v290 = vrot.slane %v286, 4
      %v291 = vsel %vm255, %v287, %v288
      %vm292 = vcmask 1031168
      %v293 = vsel %vm292, %v280, %v291
      %v294 = vsel %vm292, %v282, %v288
      %v295 = vsel %vm255, %v289, %v290
      %v296 = vsel %vm292, %v284, %v295
      %v297 = vsel %vm292, %v286, %v290
      %302 = vst [vmem:[#allocation2 + $0x30] sm:$0xff] %v293
      %303 = vst [vmem:[#allocation2 + $0x38] sm:$0xf] %v294
      %304 = vst [vmem:[#allocation2 + $0x3c] sm:$0xff] %v296
      %305 = vst [vmem:[#allocation2 + $0x44] sm:$0xf] %v297
      %v306 = vld [vmem:[%s209] sm:$0xff]
      %v307 = vld [vmem:[%s209 + $0x8] sm:$0xff]
      %v308 = vld [vmem:[%s209 + $0x10] sm:$0xff]
      %v309 = vld [vmem:[%s209 + $0x18] sm:$0xff]
      %314 = vrot.lane.b32.xlu0 %v306, 110
      %v315 = vpop.permute.xlu0 %314
      %316 = vrot.lane.b32.xlu0 %v307, 110
      %v317 = vpop.permute.xlu0 %316
      %318 = vrot.lane.b32.xlu0 %v308, 110
      %v319 = vpop.permute.xlu0 %318
      %320 = vrot.lane.b32.xlu0 %v309, 110
      %v321 = vpop.permute.xlu0 %320
      %v322 = vrot.slane %v315, 4
      %v323 = vrot.slane %v317, 4
      %v324 = vrot.slane %v319, 4
      %v325 = vrot.slane %v321, 4
      %v326 = vsel %vm255, %v322, %v323
      %vm327 = vcmask 900096
      %v328 = vsel %vm327, %v315, %v326
      %v329 = vsel %vm327, %v317, %v323
      %v330 = vsel %vm255, %v324, %v325
      %v331 = vsel %vm327, %v319, %v330
      %v332 = vsel %vm327, %v321, %v325
      %337 = vst [vmem:[#allocation2 + $0x48] sm:$0xff] %v328
      %338 = vst [vmem:[#allocation2 + $0x50] sm:$0xf] %v329
      %339 = vst [vmem:[#allocation2 + $0x54] sm:$0xff] %v331
      %340 = vst [vmem:[#allocation2 + $0x5c] sm:$0xf] %v332
      %v341 = vld [vmem:[%s209] sm:$0xff]
      %v342 = vld [vmem:[%s209 + $0x8] sm:$0xff]
      %v343 = vld [vmem:[%s209 + $0x10] sm:$0xff]
      %v344 = vld [vmem:[%s209 + $0x18] sm:$0xff]
      %349 = vrot.lane.b32.xlu0 %v341, 109
      %v350 = vpop.permute.xlu0 %349
      %351 = vrot.lane.b32.xlu0 %v342, 109
      %v352 = vpop.permute.xlu0 %351
      %353 = vrot.lane.b32.xlu0 %v343, 109
      %v354 = vpop.permute.xlu0 %353
      %355 = vrot.lane.b32.xlu0 %v344, 109
      %v356 = vpop.permute.xlu0 %355
      %v357 = vrot.slane %v350, 4
      %v358 = vrot.slane %v352, 4
      %v359 = vrot.slane %v354, 4
      %v360 = vrot.slane %v356, 4
      %v361 = vsel %vm255, %v357, %v358
      %vm362 = vcmask 891904
      %v363 = vsel %vm362, %v350, %v361
      %v364 = vsel %vm362, %v352, %v358
      %v365 = vsel %vm255, %v359, %v360
      %v366 = vsel %vm362, %v354, %v365
      %v367 = vsel %vm362, %v356, %v360
      %372 = vst [vmem:[#allocation2 + $0x60] sm:$0xff] %v363
      %373 = vst [vmem:[#allocation2 + $0x68] sm:$0xf] %v364
      %374 = vst [vmem:[#allocation2 + $0x6c] sm:$0xff] %v366
      %375 = vst [vmem:[#allocation2 + $0x74] sm:$0xf] %v367
      %v376 = vld [vmem:[%s209] sm:$0xff]
      %v377 = vld [vmem:[%s209 + $0x8] sm:$0xff]
      %v378 = vld [vmem:[%s209 + $0x10] sm:$0xff]
      %v379 = vld [vmem:[%s209 + $0x18] sm:$0xff]
      %384 = vrot.lane.b32.xlu0 %v376, 108
      %v385 = vpop.permute.xlu0 %384
      %386 = vrot.lane.b32.xlu0 %v377, 108
      %v387 = vpop.permute.xlu0 %386
      %388 = vrot.lane.b32.xlu0 %v378, 108
      %v389 = vpop.permute.xlu0 %388
      %390 = vrot.lane.b32.xlu0 %v379, 108
      %v391 = vpop.permute.xlu0 %390
      %v392 = vrot.slane %v385, 4
      %v393 = vrot.slane %v387, 4
      %v394 = vrot.slane %v389, 4
      %v395 = vrot.slane %v391, 4
      %v396 = vsel %vm255, %v392, %v393
      %vm397 = vcmask 883712
      %v398 = vsel %vm397, %v385, %v396
      %v399 = vsel %vm397, %v387, %v393
      %v400 = vsel %vm255, %v394, %v395
      %v401 = vsel %vm397, %v389, %v400
      %v402 = vsel %vm397, %v391, %v395
      %407 = vst [vmem:[#allocation2 + $0x78] sm:$0xff] %v398
      %408 = vst [vmem:[#allocation2 + $0x80] sm:$0xf] %v399
      %409 = vst [vmem:[#allocation2 + $0x84] sm:$0xff] %v401
      %410 = vst [vmem:[#allocation2 + $0x8c] sm:$0xf] %v402
      %v411 = vld [vmem:[%s209] sm:$0xff]
      %v412 = vld [vmem:[%s209 + $0x8] sm:$0xff]
      %v413 = vld [vmem:[%s209 + $0x10] sm:$0xff]
      %v414 = vld [vmem:[%s209 + $0x18] sm:$0xff]
      %419 = vrot.lane.b32.xlu0 %v411, 92
      %v420 = vpop.permute.xlu0 %419
      %421 = vrot.lane.b32.xlu0 %v412, 92
      %v422 = vpop.permute.xlu0 %421
      %423 = vrot.lane.b32.xlu0 %v413, 92
      %v424 = vpop.permute.xlu0 %423
      %425 = vrot.lane.b32.xlu0 %v414, 92
      %v426 = vpop.permute.xlu0 %425
      %v427 = vrot.slane %v420, 4
      %v428 = vrot.slane %v422, 4
      %v429 = vrot.slane %v424, 4
      %v430 = vrot.slane %v426, 4
      %v431 = vsel %vm255, %v427, %v428
      %vm432 = vcmask 752640
      %v433 = vsel %vm432, %v420, %v431
      %v434 = vsel %vm432, %v422, %v428
      %v435 = vsel %vm255, %v429, %v430
      %v436 = vsel %vm432, %v424, %v435
      %v437 = vsel %vm432, %v426, %v430
      %442 = vst [vmem:[#allocation2 + $0x90] sm:$0xff] %v433
      %443 = vst [vmem:[#allocation2 + $0x98] sm:$0xf] %v434
      %444 = vst [vmem:[#allocation2 + $0x9c] sm:$0xff] %v436
      %445 = vst [vmem:[#allocation2 + $0xa4] sm:$0xf] %v437
      %v446 = vld [vmem:[%s209] sm:$0xff]
      %v447 = vld [vmem:[%s209 + $0x8] sm:$0xff]
      %v448 = vld [vmem:[%s209 + $0x10] sm:$0xff]
      %v449 = vld [vmem:[%s209 + $0x18] sm:$0xff]
      %454 = vrot.lane.b32.xlu0 %v446, 91
      %v455 = vpop.permute.xlu0 %454
      %456 = vrot.lane.b32.xlu0 %v447, 91
      %v457 = vpop.permute.xlu0 %456
      %458 = vrot.lane.b32.xlu0 %v448, 91
      %v459 = vpop.permute.xlu0 %458
      %460 = vrot.lane.b32.xlu0 %v449, 91
      %v461 = vpop.permute.xlu0 %460
      %v462 = vrot.slane %v455, 4
      %v463 = vrot.slane %v457, 4
      %v464 = vrot.slane %v459, 4
      %v465 = vrot.slane %v461, 4
      %v466 = vsel %vm255, %v462, %v463
      %vm467 = vcmask 744448
      %v468 = vsel %vm467, %v455, %v466
      %v469 = vsel %vm467, %v457, %v463
      %v470 = vsel %vm255, %v464, %v465
      %v471 = vsel %vm467, %v459, %v470
      %v472 = vsel %vm467, %v461, %v465
      %477 = vst [vmem:[#allocation2 + $0xa8] sm:$0xff] %v468
      %478 = vst [vmem:[#allocation2 + $0xb0] sm:$0xf] %v469
      %479 = vst [vmem:[#allocation2 + $0xb4] sm:$0xff] %v471
      %480 = vst [vmem:[#allocation2 + $0xbc] sm:$0xf] %v472
      %v481 = vld [vmem:[%s209] sm:$0xff]
      %v482 = vld [vmem:[%s209 + $0x8] sm:$0xff]
      %v483 = vld [vmem:[%s209 + $0x10] sm:$0xff]
      %v484 = vld [vmem:[%s209 + $0x18] sm:$0xff]
      %489 = vrot.lane.b32.xlu0 %v481, 90
      %v490 = vpop.permute.xlu0 %489
      %491 = vrot.lane.b32.xlu0 %v482, 90
      %v492 = vpop.permute.xlu0 %491
      %493 = vrot.lane.b32.xlu0 %v483, 90
      %v494 = vpop.permute.xlu0 %493
      %495 = vrot.lane.b32.xlu0 %v484, 90
      %v496 = vpop.permute.xlu0 %495
      %v497 = vrot.slane %v490, 4
      %v498 = vrot.slane %v492, 4
      %v499 = vrot.slane %v494, 4
      %v500 = vrot.slane %v496, 4
      %v501 = vsel %vm255, %v497, %v498
      %vm502 = vcmask 736256
      %v503 = vsel %vm502, %v490, %v501
      %v504 = vsel %vm502, %v492, %v498
      %v505 = vsel %vm255, %v499, %v500
      %v506 = vsel %vm502, %v494, %v505
      %v507 = vsel %vm502, %v496, %v500
      %512 = vst [vmem:[#allocation2 + $0xc0] sm:$0xff] %v503
      %513 = vst [vmem:[#allocation2 + $0xc8] sm:$0xf] %v504
      %514 = vst [vmem:[#allocation2 + $0xcc] sm:$0xff] %v506
      %515 = vst [vmem:[#allocation2 + $0xd4] sm:$0xf] %v507
      %v516 = vld [vmem:[%s1] sm:$0xff]
      %v517 = vld [vmem:[#allocation2] sm:$0xff]
      %v518 = vld [vmem:[#allocation2 + $0x8] sm:$0xf]
      %v519 = vld [vmem:[#allocation2 + $0xc] sm:$0xff]
      %v520 = vld [vmem:[#allocation2 + $0x14] sm:$0xf]
      %v521 = vld [vmem:[#allocation2 + $0x18] sm:$0xff]
      %v522 = vld [vmem:[#allocation2 + $0x20] sm:$0xf]
      %v523 = vld [vmem:[#allocation2 + $0x24] sm:$0xff]
      %v524 = vld [vmem:[#allocation2 + $0x2c] sm:$0xf]
      %v525 = vld [vmem:[#allocation2 + $0x30] sm:$0xff]
      %v526 = vld [vmem:[#allocation2 + $0x38] sm:$0xf]
      %v527 = vld [vmem:[#allocation2 + $0x3c] sm:$0xff]
      %v528 = vld [vmem:[#allocation2 + $0x44] sm:$0xf]
      %v529 = vld [vmem:[#allocation2 + $0x48] sm:$0xff]
      %v530 = vld [vmem:[#allocation2 + $0x50] sm:$0xf]
      %v531 = vld [vmem:[#allocation2 + $0x54] sm:$0xff]
      %v532 = vld [vmem:[#allocation2 + $0x5c] sm:$0xf]
      %v533 = vld [vmem:[#allocation2 + $0x60] sm:$0xff]
      %v534 = vld [vmem:[#allocation2 + $0x68] sm:$0xf]
      %v535 = vld [vmem:[#allocation2 + $0x6c] sm:$0xff]
      %v536 = vld [vmem:[#allocation2 + $0x74] sm:$0xf]
      %v537 = vld [vmem:[#allocation2 + $0x78] sm:$0xff]
      %v538 = vld [vmem:[#allocation2 + $0x80] sm:$0xf]
      %v539 = vld [vmem:[#allocation2 + $0x84] sm:$0xff]
      %v540 = vld [vmem:[#allocation2 + $0x8c] sm:$0xf]
      %v541 = vld [vmem:[#allocation2 + $0x90] sm:$0xff]
      %v542 = vld [vmem:[#allocation2 + $0x98] sm:$0xf]
      %v543 = vld [vmem:[#allocation2 + $0x9c] sm:$0xff]
      %v544 = vld [vmem:[#allocation2 + $0xa4] sm:$0xf]
      %v545 = vld [vmem:[#allocation2 + $0xa8] sm:$0xff]
      %v546 = vld [vmem:[#allocation2 + $0xb0] sm:$0xf]
      %v547 = vld [vmem:[#allocation2 + $0xb4] sm:$0xff]
      %v548 = vld [vmem:[#allocation2 + $0xbc] sm:$0xf]
      %v549 = vld [vmem:[#allocation2 + $0xc0] sm:$0xff]
      %v550 = vld [vmem:[#allocation2 + $0xc8] sm:$0xf]
      %v551 = vld [vmem:[#allocation2 + $0xcc] sm:$0xff]
      %v552 = vld [vmem:[#allocation2 + $0xd4] sm:$0xf]
      %v554 = vunpack.c.l.b16 %v516
      %v555 = vunpack.c.h.b16 %v516
      %v556 = vpack.c.b16 %v554, %v554
      %v557 = vpack.c.b16 %v555, %v555
      %v595 = vunpack.c.l.b16 %v517
      %v596 = vunpack.c.h.b16 %v517
      %v597 = vunpack.c.l.b16 %v518
      %v598 = vunpack.c.l.b16 %v519
      %v599 = vunpack.c.h.b16 %v519
      %v600 = vunpack.c.l.b16 %v520
      %v601 = vunpack.c.l.b16 %v521
      %v602 = vunpack.c.h.b16 %v521
      %v603 = vunpack.c.l.b16 %v522
      %v604 = vunpack.c.l.b16 %v523
      %v605 = vunpack.c.h.b16 %v523
      %v606 = vunpack.c.l.b16 %v524
      %v607 = vunpack.c.l.b16 %v525
      %v608 = vunpack.c.h.b16 %v525
      %v609 = vunpack.c.l.b16 %v526
      %v610 = vunpack.c.l.b16 %v527
      %v611 = vunpack.c.h.b16 %v527
      %v612 = vunpack.c.l.b16 %v528
      %v613 = vunpack.c.l.b16 %v529
      %v614 = vunpack.c.h.b16 %v529
      %v615 = vunpack.c.l.b16 %v530
      %v616 = vunpack.c.l.b16 %v531
      %v617 = vunpack.c.h.b16 %v531
      %v618 = vunpack.c.l.b16 %v532
      %v619 = vunpack.c.l.b16 %v533
      %v620 = vunpack.c.h.b16 %v533
      %v621 = vunpack.c.l.b16 %v534
      %v622 = vunpack.c.l.b16 %v535
      %v623 = vunpack.c.h.b16 %v535
      %v624 = vunpack.c.l.b16 %v536
      %v625 = vunpack.c.l.b16 %v537
      %v626 = vunpack.c.h.b16 %v537
      %v627 = vunpack.c.l.b16 %v538
      %v628 = vunpack.c.l.b16 %v539
      %v629 = vunpack.c.h.b16 %v539
      %v630 = vunpack.c.l.b16 %v540
      %v631 = vunpack.c.l.b16 %v541
      %v632 = vunpack.c.h.b16 %v541
      %v633 = vunpack.c.l.b16 %v542
      %v634 = vunpack.c.l.b16 %v543
      %v635 = vunpack.c.h.b16 %v543
      %v636 = vunpack.c.l.b16 %v544
      %v637 = vunpack.c.l.b16 %v545
      %v638 = vunpack.c.h.b16 %v545
      %v639 = vunpack.c.l.b16 %v546
      %v640 = vunpack.c.l.b16 %v547
      %v641 = vunpack.c.h.b16 %v547
      %v642 = vunpack.c.l.b16 %v548
      %v643 = vunpack.c.l.b16 %v549
      %v644 = vunpack.c.h.b16 %v549
      %v645 = vunpack.c.l.b16 %v550
      %v646 = vunpack.c.l.b16 %v551
      %v647 = vunpack.c.h.b16 %v551
      %v648 = vunpack.c.l.b16 %v552
      %v649 = vpack.c.b16 %v598, %v595
      %v650 = vpack.c.b16 %v599, %v596
      %v651 = vpack.c.b16 %v600, %v597
      %v652 = vpack.c.b16 %v604, %v601
      %v653 = vpack.c.b16 %v605, %v602
      %v654 = vpack.c.b16 %v606, %v603
      %v655 = vpack.c.b16 %v610, %v607
      %v656 = vpack.c.b16 %v611, %v608
      %v657 = vpack.c.b16 %v612, %v609
      %v658 = vpack.c.b16 %v616, %v613
      %v659 = vpack.c.b16 %v617, %v614
      %v660 = vpack.c.b16 %v618, %v615
      %v661 = vpack.c.b16 %v622, %v619
      %v662 = vpack.c.b16 %v623, %v620
      %v663 = vpack.c.b16 %v624, %v621
      %v664 = vpack.c.b16 %v628, %v625
      %v665 = vpack.c.b16 %v629, %v626
      %v666 = vpack.c.b16 %v630, %v627
      %v667 = vpack.c.b16 %v634, %v631
      %v668 = vpack.c.b16 %v635, %v632
      %v669 = vpack.c.b16 %v636, %v633
      %v670 = vpack.c.b16 %v640, %v637
      %v671 = vpack.c.b16 %v641, %v638
      %v672 = vpack.c.b16 %v642, %v639
      %v673 = vpack.c.b16 %v646, %v643
      %v674 = vpack.c.b16 %v647, %v644
      %v675 = vpack.c.b16 %v648, %v645
      %vm703 = vcmask 130048
      %v705 = vsel %vm703, %v557, 0
      %707 = vmatpush.bf16.msra.mxu0 %v670
      %708 = vmatpush.bf16.msra.mxu0 %v667
      %709 = vmatpush.bf16.msra.mxu0 %v664
      %710 = vmatpush.bf16.msra.mxu0 %v661
      %711 = vmatpush.bf16.msra.mxu0 %v658
      %712 = vmatpush.bf16.msra.mxu0 %v655
      %713 = vmatpush.bf16.msra.mxu0 %v652
      %714 = vmatpush.bf16.msra.mxu0 %v649
      %715 = vmatmul.bf16.gmra.mxu0 %v556
      %v716 = vpop.f32.mrf.mxu0
      %v717 = vadd.f32 0.0, %v716
      %v718 = vpop.f32.mrf.mxu0
      %719 = vdwg.mxu0
      %720 = vmatpush.bf16.msra.mxu0 0
      %721 = vmatpush.bf16.msra.mxu0 0
      %722 = vmatpush.bf16.msra.mxu0 0
      %723 = vmatpush.bf16.msra.mxu0 0
      %724 = vmatpush.bf16.msra.mxu0 0
      %725 = vmatpush.bf16.msra.mxu0 0
      %726 = vmatpush.bf16.msra.mxu0 0
      %727 = vmatpush.bf16.msra.mxu0 %v673
      %728 = vmatmul.bf16.gmra.mxu0 %v705
      %v729 = vpop.f32.mrf.mxu0
      %v730 = vadd.f32 %v717, %v729
      %v731 = vpop.f32.mrf.mxu0
      %732 = vdwg.mxu0
      %733 = vmatpush.bf16.msra.mxu0 %v671
      %734 = vmatpush.bf16.msra.mxu0 %v668
      %735 = vmatpush.bf16.msra.mxu0 %v665
      %736 = vmatpush.bf16.msra.mxu0 %v662
      %737 = vmatpush.bf16.msra.mxu0 %v659
      %738 = vmatpush.bf16.msra.mxu0 %v656
      %739 = vmatpush.bf16.msra.mxu0 %v653
      %740 = vmatpush.bf16.msra.mxu0 %v650
      %741 = vmatmul.bf16.gmra.mxu0 %v556
      %v742 = vpop.f32.mrf.mxu0
      %v743 = vadd.f32 0.0, %v742
      %v744 = vpop.f32.mrf.mxu0
      %745 = vdwg.mxu0
      %746 = vmatpush.bf16.msra.mxu0 0
      %747 = vmatpush.bf16.msra.mxu0 0
      %748 = vmatpush.bf16.msra.mxu0 0
      %749 = vmatpush.bf16.msra.mxu0 0
      %750 = vmatpush.bf16.msra.mxu0 0
      %751 = vmatpush.bf16.msra.mxu0 0
      %752 = vmatpush.bf16.msra.mxu0 0
      %753 = vmatpush.bf16.msra.mxu0 %v674
      %754 = vmatmul.bf16.gmra.mxu0 %v705
      %v755 = vpop.f32.mrf.mxu0
      %v756 = vadd.f32 %v743, %v755
      %v757 = vpop.f32.mrf.mxu0
      %758 = vdwg.mxu0
      %759 = vmatpush.bf16.msra.mxu0 %v672
      %760 = vmatpush.bf16.msra.mxu0 %v669
      %761 = vmatpush.bf16.msra.mxu0 %v666
      %762 = vmatpush.bf16.msra.mxu0 %v663
      %763 = vmatpush.bf16.msra.mxu0 %v660
      %764 = vmatpush.bf16.msra.mxu0 %v657
      %765 = vmatpush.bf16.msra.mxu0 %v654
      %766 = vmatpush.bf16.msra.mxu0 %v651
      %767 = vmatmul.bf16.gmra.mxu0 %v556
      %v768 = vpop.f32.mrf.mxu0
      %v769 = vadd.f32 0.0, %v768
      %v770 = vpop.f32.mrf.mxu0
      %771 = vdwg.mxu0
      %772 = vmatpush.bf16.msra.mxu0 0
      %773 = vmatpush.bf16.msra.mxu0 0
      %774 = vmatpush.bf16.msra.mxu0 0
      %775 = vmatpush.bf16.msra.mxu0 0
      %776 = vmatpush.bf16.msra.mxu0 0
      %777 = vmatpush.bf16.msra.mxu0 0
      %778 = vmatpush.bf16.msra.mxu0 0
      %779 = vmatpush.bf16.msra.mxu0 %v675
      %780 = vmatmul.bf16.gmra.mxu0 %v705
      %v781 = vpop.f32.mrf.mxu0
      %v782 = vadd.f32 %v769, %v781
      %v783 = vpop.f32.mrf.mxu0
      %784 = vdwg.mxu0
      %v785 = vlaneseq
      %v786 = vand.u32 %v785, 127
      %v787 = vadd.s32 %v786, 128
      %v788 = vadd.s32 %v786, 256
      %vm789 = vcmp.lt.s32.totalorder %v786, 288
      %vm790 = vcmp.lt.s32.totalorder %v787, 288
      %vm791 = vcmp.lt.s32.totalorder %v788, 288
      %vm792 = vcmp.lt.s32.totalorder %v786, 0
      %v793 = vsub.s32 0, %v786
      %v794 = vsel %vm792, %v793, %v786
      %v795 = vand.u32 %v794, 65535
      %v796 = vshrl.u32 %v794, 16
      %v798 = vmul.u32 %v795, 14564
      %v799 = vmul.u32 %v795, 58254
      %v800 = vmul.u32 %v796, 14564
      %v801 = vmul.u32 %v796, 58254
      %v802 = vshll.u32 %v799, 16
      %v803 = vshrl.u32 %v799, 16
      %v804 = vshll.u32 %v800, 16
      %v805 = vshrl.u32 %v800, 16
      %vm806 = vc.u32 %v798, %v802
      %v807 = vsel %vm806, 1, 0
      %v808 = vadd.s32 %v798, %v802
      %v809 = vadd.s32 %v801, %v807
      %vm810 = vc.u32 %v808, %v804
      %v811 = vsel %vm810, 1, 0
      %v812 = vadd.s32 %v808, %v804
      %v813 = vadd.s32 %v809, %v811
      %v814 = vadd.s32 %v813, %v803
      %v815 = vadd.s32 %v814, %v805
      %v816 = vshrl.u32 %v815, 4
      %v817 = vmul.u32 %v816, 18
      %v818 = vsub.s32 %v794, %v817
      %v819 = vsub.s32 0, %v818
      %v820 = vsel %vm792, %v819, %v818
      %vm821 = vcmp.lt.s32.totalorder %v787, 0
      %v822 = vsub.s32 0, %v787
      %v823 = vsel %vm821, %v822, %v787
      %v824 = vand.u32 %v823, 65535
      %v825 = vshrl.u32 %v823, 16
      %v827 = vmul.u32 %v824, 14564
      %v828 = vmul.u32 %v824, 58254
      %v829 = vmul.u32 %v825, 14564
      %v830 = vmul.u32 %v825, 58254
      %v831 = vshll.u32 %v828, 16
      %v832 = vshrl.u32 %v828, 16
      %v833 = vshll.u32 %v829, 16
      %v834 = vshrl.u32 %v829, 16
      %vm835 = vc.u32 %v827, %v831
      %v836 = vsel %vm835, 1, 0
      %v837 = vadd.s32 %v827, %v831
      %v838 = vadd.s32 %v830, %v836
      %vm839 = vc.u32 %v837, %v833
      %v840 = vsel %vm839, 1, 0
      %v841 = vadd.s32 %v837, %v833
      %v842 = vadd.s32 %v838, %v840
      %v843 = vadd.s32 %v842, %v832
      %v844 = vadd.s32 %v843, %v834
      %v845 = vshrl.u32 %v844, 4
      %v846 = vmul.u32 %v845, 18
      %v847 = vsub.s32 %v823, %v846
      %v848 = vsub.s32 0, %v847
      %v849 = vsel %vm821, %v848, %v847
      %vm850 = vcmp.lt.s32.totalorder %v788, 0
      %v851 = vsub.s32 0, %v788
      %v852 = vsel %vm850, %v851, %v788
      %v853 = vand.u32 %v852, 65535
      %v854 = vshrl.u32 %v852, 16
      %v856 = vmul.u32 %v853, 14564
      %v857 = vmul.u32 %v853, 58254
      %v858 = vmul.u32 %v854, 14564
      %v859 = vmul.u32 %v854, 58254
      %v860 = vshll.u32 %v857, 16
      %v861 = vshrl.u32 %v857, 16
      %v862 = vshll.u32 %v858, 16
      %v863 = vshrl.u32 %v858, 16
      %vm864 = vc.u32 %v856, %v860
      %v865 = vsel %vm864, 1, 0
      %v866 = vadd.s32 %v856, %v860
      %v867 = vadd.s32 %v859, %v865
      %vm868 = vc.u32 %v866, %v862
      %v869 = vsel %vm868, 1, 0
      %v870 = vadd.s32 %v866, %v862
      %v871 = vadd.s32 %v867, %v869
      %v872 = vadd.s32 %v871, %v861
      %v873 = vadd.s32 %v872, %v863
      %v874 = vshrl.u32 %v873, 4
      %v875 = vmul.u32 %v874, 18
      %v876 = vsub.s32 %v852, %v875
      %v877 = vsub.s32 0, %v876
      %v878 = vsel %vm850, %v877, %v876
      %vm879 = vcmp.ne.s32.totalorder %v820, 0
      %vm880 = vcmp.ne.s32.totalorder %v849, 0
      %vm881 = vcmp.ne.s32.totalorder %v878, 0
      %vm882 = vcmp.lt.s32.totalorder %v820, 0
      %vm883 = vcmp.lt.s32.totalorder %v849, 0
      %vm884 = vcmp.lt.s32.totalorder %v878, 0
      %vm885 = vmand %vm882, %vm879
      %vm886 = vmand %vm883, %vm880
      %vm887 = vmand %vm884, %vm881
      %v888 = vadd.s32 %v820, 18
      %v889 = vadd.s32 %v849, 18
      %v890 = vadd.s32 %v878, 18
      %v891 = vsel %vm885, %v888, %v820
      %v892 = vsel %vm886, %v889, %v849
      %v893 = vsel %vm887, %v890, %v878
      %vm894 = vcmp.lt.s32.totalorder %v891, 16
      %vm895 = vcmp.lt.s32.totalorder %v892, 16
      %vm896 = vcmp.lt.s32.totalorder %v893, 16
      %vm897 = vmand %vm789, %vm894
      %vm898 = vmand %vm790, %vm895
      %vm899 = vmand %vm791, %vm896
      %v900 = vsel %vm897, 1, 0
      %v901 = vsel %vm898, 1, 0
      %v902 = vsel %vm899, 1, 0
      %vm903 = vcmp.eq.s32.totalorder %v900, 1
      %vm904 = vcmp.eq.s32.totalorder %v901, 1
      %vm905 = vcmp.eq.s32.totalorder %v902, 1
      %v906 = vsel %vm903, %v730, 0.0
      %v907 = vsel %vm904, %v756, 0.0
      %v908 = vsel %vm905, %v782, 0.0
      %v909 = vadd.f32 %v906, %v907
      %v910 = vadd.f32 %v909, %v908
      %911 = vadd.xlane.f32.xlu0 %v910
      %v912 = vpop.xlane.xlu0 %911
      %vm913 = vcmask 7168
      %914 = vst.msk [vmem:[%s225] sm:$0xff] %vm913, %v912
      %v915 = vmul.f32 %v906, %v906
      %v916 = vmul.f32 %v907, %v907
      %v917 = vmul.f32 %v908, %v908
      %v918 = vadd.f32 %v915, %v916
      %v919 = vadd.f32 %v918, %v917
      %920 = vadd.xlane.f32.xlu0 %v919
      %v921 = vpop.xlane.xlu0 %920
      %vm922 = vcmask 15368
      %923 = vst.msk [vmem:[%s225] sm:$0xff] %vm922, %v921
      %v924 = vpack.c.bf16 %v756, %v730
      %v925 = vpack.c.bf16 %v782, %v782
      %926 = vst [vmem:[%s218] sm:$0xff] %v924
      %927 = vst [vmem:[%s218 + $0x8] sm:$0xf] %v925
      %p928 = scmp.lt.s32.totalorder %s19, 1
      %s929 = scalar_select %p928, %s19, 1
      %p930 = scmp.lt.s32.totalorder %s20, 0
      %s931 = scalar_select %p930, %s20, 0
      %s932 = smul.addr %s931, 3
      %s933 = smul.addr %s929, 3
      %s934 = sadd.s32 %s932, %s933
      %s935 = smul.addr %s934, 4
      %s936 = scalar_lea.vmem %s2, %s935
      %p937 = scmp.lt.s32.totalorder %s19, 1
      %s938 = scalar_select %p937, %s19, 1
      %p939 = scmp.lt.s32.totalorder %s20, 0
      %s940 = scalar_select %p939, %s20, 0
      %s941 = sadd.s32 %s940, %s938
      %s942 = smul.addr %s941, 8
      %s943 = scalar_lea.vmem %s3, %s942
      // Predicated region
      $region29: #{conv_block_forward.2} parent=27 // pred_check
        %p944 = pneg %p96
      $region30: #{conv_block_forward.2} parent=27 // pred_check_branch
        %946 = sbr.rel (%p944) target = $region32
      $region31: #{conv_block_forward.2} parent=27 // pred_region
        _
      $region32: #{conv_block_forward.2} parent=27 // pred_fallthru
        _
      // Predicated region
      $region33: #{conv_block_forward.2} parent=27 // pred_check
        %p947 = pneg %p124
      $region34: #{conv_block_forward.2} parent=27 // pred_check_branch
        %949 = sbr.rel (%p947) target = $region36
      $region35: #{conv_block_forward.2} parent=27 // pred_region
        _
      $region36: #{conv_block_forward.2} parent=27 // pred_fallthru
        _
    $region28: #{conv_block_forward.2} parent=5 // pred_fallthru
      _
    %p950 = scmp.le.s32.totalorder 2, %s10
    // Predicated region
    $region37: #{conv_block_forward.2} parent=5 // pred_check
      %p951 = pneg %p950
    $region38: #{conv_block_forward.2} parent=5 // pred_check_branch
      %953 = sbr.rel (%p951) target = $region40
    $region39: #{conv_block_forward.2} parent=5 // pred_region
      %s954 = ssub.s32 %s10, 2
      // Predicated region
      $region41: #{conv_block_forward.2} parent=39 // pred_check
        %p955 = pneg %p102
      $region42: #{conv_block_forward.2} parent=39 // pred_check_branch
        %957 = sbr.rel (%p955) target = $region44
      $region43: #{conv_block_forward.2} parent=39 // pred_region
        %p958 = scmp.lt.s32.totalorder %s21, 1
        %s959 = scalar_select %p958, %s21, 1
        %p960 = scmp.lt.s32.totalorder %s22, 0
        %s961 = scalar_select %p960, %s22, 0
        %s962 = smul.addr %s961, 3
        %s963 = smul.addr %s959, 3
        %s964 = sadd.s32 %s962, %s963
        %s965 = smul.addr %s964, 4
        %s966 = scalar_lea.vmem %s2, %s965
      $region44: #{conv_block_forward.2} parent=39 // pred_fallthru
        _
      // Predicated region
      $region45: #{conv_block_forward.2} parent=39 // pred_check
        %p967 = pneg %p130
      $region46: #{conv_block_forward.2} parent=39 // pred_check_branch
        %969 = sbr.rel (%p967) target = $region48
      $region47: #{conv_block_forward.2} parent=39 // pred_region
        %p970 = scmp.lt.s32.totalorder %s21, 1
        %s971 = scalar_select %p970, %s21, 1
        %p972 = scmp.lt.s32.totalorder %s22, 0
        %s973 = scalar_select %p972, %s22, 0
        %s974 = sadd.s32 %s973, %s971
        %s975 = smul.addr %s974, 8
        %s976 = scalar_lea.vmem %s3, %s975
      $region48: #{conv_block_forward.2} parent=39 // pred_fallthru
        _
    $region40: #{conv_block_forward.2} parent=5 // pred_fallthru
      _
  $region6: #{conv_block_forward.2} parent=0 // loop_footer
    %s14 = sadd.s32 1, %s10
  $region7: #{conv_block_forward.2} parent=0 // loop_footer_branch
    %9 = sbr.rel target = $region3
  $region8: #{conv_block_forward.2} parent=0 // loop_exit
    _

</llo_original>
